<compile_context>
chip_gen: v6e
topology: v6e:2x2x1
jax: 0.10.0
libtpu: 0.0.40
codegen_flags: <defaults>
</compile_context>

<pallas_src>
import functools

import jax
import jax.numpy as jnp
from jax import lax
from jax.experimental import pallas as pl
from jax.experimental.pallas import tpu as pltpu


def elstm_kernel(x_ref, wih1_ref, whh1_ref, b1_ref, wih2_ref, whh2_ref, b2_ref,
                 hn_ref, cn_ref,
                 state, xp, *, hidden, chunk, seq_len):
    H = hidden
    ci = pl.program_id(0)

    @pl.when(ci == 0)
    def _():
        state[...] = jnp.zeros_like(state)

    # Hoisted layer-1 input projection for the whole chunk (bias folded in):
    # one MXU matmul with a real M dimension, outside the serial recurrence.
    xp[...] = (jnp.dot(x_ref[...], wih1_ref[...],
                       preferred_element_type=jnp.float32)
               + b1_ref[...])

    # Number of valid timesteps in this chunk (last chunk may be ragged).
    n_valid = jnp.minimum(chunk, seq_len - ci * chunk)

    # Loop-invariant operands hoisted off the per-step critical path.
    whh1 = whh1_ref[...]
    wih2 = wih2_ref[...]
    whh2 = whh2_ref[...]
    b2 = b2_ref[...]

    def gates_to_hc(g, c_prev):
        # Gate order along 4H (permuted in the wrapper): (i, f, o, g) -> one
        # contiguous sigmoid + one tanh instead of full-width sigmoid AND tanh.
        sig = jax.nn.sigmoid(g[:, 0:3 * H])
        i = sig[:, 0 * H:1 * H]
        f = sig[:, 1 * H:2 * H]
        o = sig[:, 2 * H:3 * H]
        gg = jnp.tanh(g[:, 3 * H:4 * H])
        c_new = f * c_prev + i * gg
        h_new = o * jnp.tanh(c_new)
        return h_new, c_new

    h1 = state[0:1, :]
    c1 = state[1:2, :]
    h2 = state[2:3, :]
    c2 = state[3:4, :]

    # Prologue: layer-1 for local step 0 (n_valid >= 1 always holds).
    g1 = xp[0:1, :] + jnp.dot(h1.astype(jnp.bfloat16), whh1,
                              preferred_element_type=jnp.float32)
    h1, c1 = gates_to_hc(g1, c1)

    # Skewed recurrence: iteration t computes layer-1 step t and layer-2 step
    # t-1; both read the same pre-update h1, so their MXU/EUP/VPU work overlaps.
    def step(t, carry):
        h1, c1, h2, c2 = carry
        h1_bf = h1.astype(jnp.bfloat16)

        # Layer 1, step t (x-projection already hoisted into xp).
        tr = jnp.minimum(t, chunk - 1)          # keep masked tail reads in-bounds
        g1 = xp[pl.ds(tr, 1), :] + jnp.dot(h1_bf, whh1,
                                           preferred_element_type=jnp.float32)
        h1n, c1n = gates_to_hc(g1, c1)

        # Layer 2, step t-1: h1@W_ih2 + h2@W_hh2 (no per-step lane concat).
        g2 = (jnp.dot(h1_bf, wih2, preferred_element_type=jnp.float32)
              + jnp.dot(h2.astype(jnp.bfloat16), whh2,
                        preferred_element_type=jnp.float32)
              + b2)
        h2n, c2n = gates_to_hc(g2, c2)

        # Ragged last chunk: select (never arithmetic-mask) the valid updates.
        upd1 = t < n_valid
        upd2 = t - 1 < n_valid
        h1 = jnp.where(upd1, h1n, h1)
        c1 = jnp.where(upd1, c1n, c1)
        h2 = jnp.where(upd2, h2n, h2)
        c2 = jnp.where(upd2, c2n, c2)
        return h1, c1, h2, c2

    unroll = chunk if chunk <= 32 else 8
    h1, c1, h2, c2 = lax.fori_loop(1, chunk + 1, step, (h1, c1, h2, c2),
                                   unroll=unroll)

    # Persist recurrent state across chunks.
    state[0:1, :] = h1
    state[1:2, :] = c1
    state[2:3, :] = h2
    state[3:4, :] = c2

    # Final (h_n, c_n) written exactly once, on the last grid step.
    @pl.when(ci == pl.num_programs(0) - 1)
    def _():
        hn_ref[0:1, :] = h1
        hn_ref[1:2, :] = h2
        cn_ref[0:1, :] = c1
        cn_ref[1:2, :] = c2


def elstm_forward(x, params, hidden_size, chunk=128):
    """x: (seq_len, 1, input_size) float32 -> (h_n, c_n), each (2, 1, hidden)."""
    seq_len, batch, input_size = x.shape
    assert batch == 1
    H = hidden_size
    chunk = min(chunk, seq_len)
    if chunk < seq_len:
        assert chunk % 8 == 0, "time chunk must be a multiple of 8 (sublane tiling)"
    num_chunks = pl.cdiv(seq_len, chunk)

    wih1, whh1, b1, wih2, whh2, b2 = params

    # Permute gate columns (i, f, g, o) -> (i, f, o, g): sigmoid becomes one
    # contiguous [:, :3H] slice and tanh the trailing [:, 3H:] slice.
    def perm(w):
        return jnp.concatenate(
            [w[:, 0:2 * H], w[:, 3 * H:4 * H], w[:, 2 * H:3 * H]], axis=1)

    wih1_bf = perm(wih1).astype(jnp.bfloat16)
    whh1_bf = perm(whh1).astype(jnp.bfloat16)
    wih2_bf = perm(wih2).astype(jnp.bfloat16)
    whh2_bf = perm(whh2).astype(jnp.bfloat16)
    b1_p = perm(b1)
    b2_p = perm(b2)

    # bf16 matmul operands (MXU-native); f32 biases/accumulation/state math.
    x2d = x.reshape(seq_len, input_size).astype(jnp.bfloat16)

    # Explicit scoped-VMEM limit (defaults: 16 MiB v5e / 32 MiB v6e,v7x),
    # capped at 64 MiB (v7x physical per-core VMEM).
    est = (2 * chunk * input_size * 2                     # x chunk, double-buffered bf16
           + 2 * (input_size + 3 * H) * 4 * H * 2         # weights, double-buffered bf16
           + 2 * 2 * 4 * H * 4                            # biases
           + chunk * 4 * H * 4                            # xp scratch (f32)
           + 4 * H * 4 + (1 << 20))                       # state + slack
    vmem_limit = int(min(max(2 * est, 32 * 2 ** 20), 64 * 2 ** 20))

    const2d = lambda shape: pl.BlockSpec(shape, lambda c: (0, 0))
    kernel = functools.partial(elstm_kernel, hidden=H, chunk=chunk, seq_len=seq_len)

    h_n, c_n = pl.pallas_call(
        kernel,
        out_shape=(jax.ShapeDtypeStruct((2, H), jnp.float32),
                   jax.ShapeDtypeStruct((2, H), jnp.float32)),
        grid_spec=pltpu.PrefetchScalarGridSpec(
            num_scalar_prefetch=0,
            grid=(num_chunks,),
            in_specs=[
                pl.BlockSpec((chunk, input_size), lambda c: (c, 0)),  # x chunk
                const2d((input_size, 4 * H)),                         # W_ih l0^T
                const2d((H, 4 * H)),                                  # W_hh l0^T
                const2d((1, 4 * H)),                                  # bias l0
                const2d((H, 4 * H)),                                  # W_ih l1^T
                const2d((H, 4 * H)),                                  # W_hh l1^T
                const2d((1, 4 * H)),                                  # bias l1
            ],
            out_specs=[
                pl.BlockSpec((2, H), lambda c: (0, 0)),
                pl.BlockSpec((2, H), lambda c: (0, 0)),
            ],
            scratch_shapes=[
                pltpu.VMEM((4, H), jnp.float32),          # [h1; c1; h2; c2]
                pltpu.VMEM((chunk, 4 * H), jnp.float32),  # hoisted x @ W_ih1 + b1
            ],
        ),
        # Recurrence across time chunks -> "arbitrary" (serial on one core).
        compiler_params=pltpu.CompilerParams(
            dimension_semantics=("arbitrary",),
            vmem_limit_bytes=vmem_limit),
    )(x2d, wih1_bf, whh1_bf, b1_p, wih2_bf, whh2_bf, b2_p)

    return h_n.reshape(2, 1, H), c_n.reshape(2, 1, H)


def make_params(key, input_size, hidden_size):
    """Deterministic params, PyTorch-style uniform(-1/sqrt(H), 1/sqrt(H)).

    Returned already transposed: W_ih^T (in, 4H), W_hh^T (H, 4H), bias (1, 4H)
    with bias = b_ih + b_hh. Gate order along the 4H axis is (i, f, g, o),
    exactly as in torch.nn.LSTM (the kernel wrapper permutes internally).
    """
    H = hidden_size
    bound = 1.0 / jnp.sqrt(jnp.float32(H))
    ks = jax.random.split(key, 8)
    u = lambda k, shape: jax.random.uniform(k, shape, jnp.float32, -bound, bound)
    wih1 = u(ks[0], (input_size, 4 * H))
    whh1 = u(ks[1], (H, 4 * H))
    b1 = u(ks[2], (1, 4 * H)) + u(ks[3], (1, 4 * H))
    wih2 = u(ks[4], (H, 4 * H))
    whh2 = u(ks[5], (H, 4 * H))
    b2 = u(ks[6], (1, 4 * H)) + u(ks[7], (1, 4 * H))
    return (wih1, whh1, b1, wih2, whh2, b2)


def elstm_reference(x, params, hidden_size):
    """Pure-JAX reference (lax.scan) with identical semantics; matmul operands
    cast to bf16 (f32 accumulation) to mirror the kernel's MXU dtype choice."""
    H = hidden_size
    bf = jnp.bfloat16
    wih1, whh1, b1, wih2, whh2, b2 = params
    wih1, whh1, wih2, whh2 = (w.astype(bf) for w in (wih1, whh1, wih2, whh2))
    b1v, b2v = b1[0], b2[0]
    x2d = x.reshape(x.shape[0], x.shape[2]).astype(bf)

    def cell(x_in, h, c, wih, whh, b):
        g = (jnp.dot(x_in, wih, preferred_element_type=jnp.float32)
             + jnp.dot(h.astype(bf), whh, preferred_element_type=jnp.float32)
             + b)
        i = jax.nn.sigmoid(g[0 * H:1 * H])
        f = jax.nn.sigmoid(g[1 * H:2 * H])
        gg = jnp.tanh(g[2 * H:3 * H])
        o = jax.nn.sigmoid(g[3 * H:4 * H])
        c_new = f * c + i * gg
        return o * jnp.tanh(c_new), c_new

    def step(carry, x_t):
        h1, c1, h2, c2 = carry
        h1, c1 = cell(x_t, h1, c1, wih1, whh1, b1v)
        h2, c2 = cell(h1.astype(bf), h2, c2, wih2, whh2, b2v)
        return (h1, c1, h2, c2), None

    z = jnp.zeros((H,), jnp.float32)
    (h1, c1, h2, c2), _ = lax.scan(step, (z, z, z, z), x2d)
    h_n = jnp.stack([h1, h2]).reshape(2, 1, H)
    c_n = jnp.stack([c1, c2]).reshape(2, 1, H)
    return h_n, c_n


if __name__ == "__main__":
    key = jax.random.PRNGKey(0)
    k_x, k_p, k_x2, k_x3 = jax.random.split(key, 4)

    input_size, hidden_size = 32, 32
    params = make_params(k_p, input_size, hidden_size)

    # Config 1: seq_len=8 -> single time chunk (grid = 1).
    x = jax.random.normal(k_x, (8, 1, input_size), jnp.float32)
    h_n, c_n = elstm_forward(x, params, hidden_size)
    jax.block_until_ready((h_n, c_n))
    h_ref, c_ref = elstm_reference(x, params, hidden_size)
    assert h_n.shape == (2, 1, hidden_size) and c_n.shape == (2, 1, hidden_size)
    assert jnp.allclose(h_n, h_ref, atol=1e-3, rtol=1e-3)
    assert jnp.allclose(c_n, c_ref, atol=1e-3, rtol=1e-3)

    # Config 2: seq_len=16, chunk=8 -> 2 full chunks (state carried across chunks).
    x2 = jax.random.normal(k_x2, (16, 1, input_size), jnp.float32)
    h_n2, c_n2 = elstm_forward(x2, params, hidden_size, chunk=8)
    jax.block_until_ready((h_n2, c_n2))
    h_ref2, c_ref2 = elstm_reference(x2, params, hidden_size)
    assert jnp.allclose(h_n2, h_ref2, atol=1e-3, rtol=1e-3)
    assert jnp.allclose(c_n2, c_ref2, atol=1e-3, rtol=1e-3)

    # Config 3: seq_len=13, chunk=8 -> ragged last chunk (where-select mask path).
    x3 = jax.random.normal(k_x3, (13, 1, input_size), jnp.float32)
    h_n3, c_n3 = elstm_forward(x3, params, hidden_size, chunk=8)
    jax.block_until_ready((h_n3, c_n3))
    h_ref3, c_ref3 = elstm_reference(x3, params, hidden_size)
    assert jnp.allclose(h_n3, h_ref3, atol=1e-3, rtol=1e-3)
    assert jnp.allclose(c_n3, c_ref3, atol=1e-3, rtol=1e-3)

    print("KERNEL_OK")
</pallas_src>

<mosaic_0001>
module attributes {stable_mosaic.version = 11 : i64} {
  func.func @elstm_kernel(%arg0: i32, %arg1: memref<8x32xbf16, #tpu.memory_space<vmem>>, %arg2: memref<32x128xbf16, #tpu.memory_space<vmem>>, %arg3: memref<32x128xbf16, #tpu.memory_space<vmem>>, %arg4: memref<1x128xf32, #tpu.memory_space<vmem>>, %arg5: memref<32x128xbf16, #tpu.memory_space<vmem>>, %arg6: memref<32x128xbf16, #tpu.memory_space<vmem>>, %arg7: memref<1x128xf32, #tpu.memory_space<vmem>>, %arg8: memref<2x32xf32, #tpu.memory_space<vmem>>, %arg9: memref<2x32xf32, #tpu.memory_space<vmem>>, %arg10: memref<4x32xf32, #tpu.memory_space<vmem>>, %arg11: memref<8x128xf32, #tpu.memory_space<vmem>>) attributes {dimension_semantics = [#tpu.dimension_semantics<arbitrary>], iteration_bounds = array<i64: 1>, scalar_prefetch = 0 : i64, scratch_operands = 2 : i64, tpu.core_type = #tpu.core_type<tc>, window_params = [{transform_indices = @transform_0, window_bounds = array<i64: 8, 32>}, {pipeline_mode = #tpu.pipeline_mode<synchronous>, transform_indices = @transform_1, window_bounds = array<i64: 32, 128>}, {pipeline_mode = #tpu.pipeline_mode<synchronous>, transform_indices = @transform_2, window_bounds = array<i64: 32, 128>}, {pipeline_mode = #tpu.pipeline_mode<synchronous>, transform_indices = @transform_3, window_bounds = array<i64: 1, 128>}, {pipeline_mode = #tpu.pipeline_mode<synchronous>, transform_indices = @transform_4, window_bounds = array<i64: 32, 128>}, {pipeline_mode = #tpu.pipeline_mode<synchronous>, transform_indices = @transform_5, window_bounds = array<i64: 32, 128>}, {pipeline_mode = #tpu.pipeline_mode<synchronous>, transform_indices = @transform_6, window_bounds = array<i64: 1, 128>}, {pipeline_mode = #tpu.pipeline_mode<synchronous>, transform_indices = @transform_7, window_bounds = array<i64: 2, 32>}, {pipeline_mode = #tpu.pipeline_mode<synchronous>, transform_indices = @transform_8, window_bounds = array<i64: 2, 32>}]} {
    %c0_i32 = arith.constant 0 : i32
    %0 = arith.cmpi eq, %arg0, %c0_i32 : i32
    %1 = arith.extui %0 : i1 to i32
    %c0_i32_0 = arith.constant 0 : i32
    %2 = arith.cmpi ne, %1, %c0_i32_0 : i32
    scf.if %2 {
      %cst_103 = arith.constant 0.000000e+00 : f32
      %448 = vector.broadcast %cst_103 : f32 to vector<4x32xf32>
      %c0_104 = arith.constant 0 : index
      %c0_105 = arith.constant 0 : index
      %449 = vector.load %arg10[%c0_104, %c0_105] : memref<4x32xf32, #tpu.memory_space<vmem>>, vector<4x32xf32>
      tpu.vector_store %arg10[%c0_104, %c0_105], %448 {strides = array<i32>} : memref<4x32xf32, #tpu.memory_space<vmem>>, vector<4x32xf32>,
    } else {
    }
    %c0 = arith.constant 0 : index
    %c0_1 = arith.constant 0 : index
    %3 = vector.load %arg1[%c0, %c0_1] : memref<8x32xbf16, #tpu.memory_space<vmem>>, vector<8x32xbf16>
    %c0_2 = arith.constant 0 : index
    %c0_3 = arith.constant 0 : index
    %4 = vector.load %arg2[%c0_2, %c0_3] : memref<32x128xbf16, #tpu.memory_space<vmem>>, vector<32x128xbf16>
    %cst = arith.constant dense<0.000000e+00> : vector<8x128xf32>
    %5 = tpu.matmul %3, %4, %cst {dimension_numbers = #tpu.dot_dimension_numbers<[1], [0], [0], [1], [0, 0, 1, 1], [], []>} : vector<8x32xbf16>, vector<32x128xbf16>, vector<8x128xf32> -> vector<8x128xf32>
    %c0_4 = arith.constant 0 : index
    %c0_5 = arith.constant 0 : index
    %6 = vector.load %arg4[%c0_4, %c0_5] : memref<1x128xf32, #tpu.memory_space<vmem>>, vector<1x128xf32>
    %7 = vector.broadcast %6 : vector<1x128xf32> to vector<8x128xf32>
    %8 = arith.addf %5, %7 : vector<8x128xf32>
    %c0_6 = arith.constant 0 : index
    %c0_7 = arith.constant 0 : index
    %9 = vector.load %arg11[%c0_6, %c0_7] : memref<8x128xf32, #tpu.memory_space<vmem>>, vector<8x128xf32>
    tpu.vector_store %arg11[%c0_6, %c0_7], %8 {strides = array<i32>} : memref<8x128xf32, #tpu.memory_space<vmem>>, vector<8x128xf32>,
    %c8_i32 = arith.constant 8 : i32
    %10 = arith.muli %arg0, %c8_i32 : i32
    %c8_i32_8 = arith.constant 8 : i32
    %11 = arith.subi %c8_i32_8, %10 : i32
    %c8_i32_9 = arith.constant 8 : i32
    %12 = arith.minsi %c8_i32_9, %11 : i32
    %c0_10 = arith.constant 0 : index
    %c0_11 = arith.constant 0 : index
    %13 = vector.load %arg3[%c0_10, %c0_11] : memref<32x128xbf16, #tpu.memory_space<vmem>>, vector<32x128xbf16>
    %c0_12 = arith.constant 0 : index
    %c0_13 = arith.constant 0 : index
    %14 = vector.load %arg5[%c0_12, %c0_13] : memref<32x128xbf16, #tpu.memory_space<vmem>>, vector<32x128xbf16>
    %c0_14 = arith.constant 0 : index
    %c0_15 = arith.constant 0 : index
    %15 = vector.load %arg6[%c0_14, %c0_15] : memref<32x128xbf16, #tpu.memory_space<vmem>>, vector<32x128xbf16>
    %c0_16 = arith.constant 0 : index
    %c0_17 = arith.constant 0 : index
    %16 = vector.load %arg7[%c0_16, %c0_17] : memref<1x128xf32, #tpu.memory_space<vmem>>, vector<1x128xf32>
    %c0_18 = arith.constant 0 : index
    %c0_19 = arith.constant 0 : index
    %17 = vector.load %arg10[%c0_18, %c0_19] : memref<4x32xf32, #tpu.memory_space<vmem>>, vector<1x32xf32>
    %c1 = arith.constant 1 : index
    %c0_20 = arith.constant 0 : index
    %18 = vector.load %arg10[%c1, %c0_20] : memref<4x32xf32, #tpu.memory_space<vmem>>, vector<1x32xf32>
    %c2 = arith.constant 2 : index
    %c0_21 = arith.constant 0 : index
    %19 = vector.load %arg10[%c2, %c0_21] : memref<4x32xf32, #tpu.memory_space<vmem>>, vector<1x32xf32>
    %c3 = arith.constant 3 : index
    %c0_22 = arith.constant 0 : index
    %20 = vector.load %arg10[%c3, %c0_22] : memref<4x32xf32, #tpu.memory_space<vmem>>, vector<1x32xf32>
    %c0_23 = arith.constant 0 : index
    %c0_24 = arith.constant 0 : index
    %21 = vector.load %arg11[%c0_23, %c0_24] : memref<8x128xf32, #tpu.memory_space<vmem>>, vector<1x128xf32>
    %22 = arith.truncf %17 : vector<1x32xf32> to vector<1x32xbf16>
    %cst_25 = arith.constant dense<0.000000e+00> : vector<1x128xf32>
    %23 = tpu.matmul %22, %13, %cst_25 {dimension_numbers = #tpu.dot_dimension_numbers<[1], [0], [0], [1], [0, 0, 1, 1], [], []>} : vector<1x32xbf16>, vector<32x128xbf16>, vector<1x128xf32> -> vector<1x128xf32>
    %24 = arith.addf %21, %23 : vector<1x128xf32>
    %25 = vector.extract_strided_slice %24 {offsets = [0, 0], sizes = [1, 96], strides = [1, 1]} : vector<1x128xf32> to vector<1x96xf32>
    %26 = arith.negf %25 : vector<1x96xf32>
    %27 = math.exp %26 : vector<1x96xf32>
    %cst_26 = arith.constant 1.000000e+00 : f32
    %28 = vector.broadcast %cst_26 : f32 to vector<1x96xf32>
    %29 = arith.addf %28, %27 : vector<1x96xf32>
    %30 = arith.divf %28, %29 : vector<1x96xf32>
    %31 = vector.extract_strided_slice %30 {offsets = [0, 0], sizes = [1, 32], strides = [1, 1]} : vector<1x96xf32> to vector<1x32xf32>
    %32 = vector.extract_strided_slice %30 {offsets = [0, 32], sizes = [1, 32], strides = [1, 1]} : vector<1x96xf32> to vector<1x32xf32>
    %33 = vector.extract_strided_slice %30 {offsets = [0, 64], sizes = [1, 32], strides = [1, 1]} : vector<1x96xf32> to vector<1x32xf32>
    %34 = vector.extract_strided_slice %24 {offsets = [0, 96], sizes = [1, 32], strides = [1, 1]} : vector<1x128xf32> to vector<1x32xf32>
    %35 = math.tanh %34 : vector<1x32xf32>
    %36 = arith.mulf %32, %18 : vector<1x32xf32>
    %37 = arith.mulf %31, %35 : vector<1x32xf32>
    %38 = arith.addf %36, %37 : vector<1x32xf32>
    %39 = math.tanh %38 : vector<1x32xf32>
    %40 = arith.mulf %33, %39 : vector<1x32xf32>
    %c1_i32 = arith.constant 1 : i32
    %41 = arith.truncf %40 : vector<1x32xf32> to vector<1x32xbf16>
    %c7_i32 = arith.constant 7 : i32
    %42 = arith.minsi %c1_i32, %c7_i32 : i32
    %43 = arith.index_cast %42 : i32 to index
    %c0_27 = arith.constant 0 : index
    %44 = vector.load %arg11[%43, %c0_27] : memref<8x128xf32, #tpu.memory_space<vmem>>, vector<1x128xf32>
    %cst_28 = arith.constant dense<0.000000e+00> : vector<1x128xf32>
    %45 = tpu.matmul %41, %13, %cst_28 {dimension_numbers = #tpu.dot_dimension_numbers<[1], [0], [0], [1], [0, 0, 1, 1], [], []>} : vector<1x32xbf16>, vector<32x128xbf16>, vector<1x128xf32> -> vector<1x128xf32>
    %46 = arith.addf %44, %45 : vector<1x128xf32>
    %47 = vector.extract_strided_slice %46 {offsets = [0, 0], sizes = [1, 96], strides = [1, 1]} : vector<1x128xf32> to vector<1x96xf32>
    %48 = arith.negf %47 : vector<1x96xf32>
    %49 = math.exp %48 : vector<1x96xf32>
    %cst_29 = arith.constant 1.000000e+00 : f32
    %50 = vector.broadcast %cst_29 : f32 to vector<1x96xf32>
    %51 = arith.addf %50, %49 : vector<1x96xf32>
    %52 = arith.divf %50, %51 : vector<1x96xf32>
    %53 = vector.extract_strided_slice %52 {offsets = [0, 0], sizes = [1, 32], strides = [1, 1]} : vector<1x96xf32> to vector<1x32xf32>
    %54 = vector.extract_strided_slice %52 {offsets = [0, 32], sizes = [1, 32], strides = [1, 1]} : vector<1x96xf32> to vector<1x32xf32>
    %55 = vector.extract_strided_slice %52 {offsets = [0, 64], sizes = [1, 32], strides = [1, 1]} : vector<1x96xf32> to vector<1x32xf32>
    %56 = vector.extract_strided_slice %46 {offsets = [0, 96], sizes = [1, 32], strides = [1, 1]} : vector<1x128xf32> to vector<1x32xf32>
    %57 = math.tanh %56 : vector<1x32xf32>
    %58 = arith.mulf %54, %38 : vector<1x32xf32>
    %59 = arith.mulf %53, %57 : vector<1x32xf32>
    %60 = arith.addf %58, %59 : vector<1x32xf32>
    %61 = math.tanh %60 : vector<1x32xf32>
    %62 = arith.mulf %55, %61 : vector<1x32xf32>
    %cst_30 = arith.constant dense<0.000000e+00> : vector<1x128xf32>
    %63 = tpu.matmul %41, %14, %cst_30 {dimension_numbers = #tpu.dot_dimension_numbers<[1], [0], [0], [1], [0, 0, 1, 1], [], []>} : vector<1x32xbf16>, vector<32x128xbf16>, vector<1x128xf32> -> vector<1x128xf32>
    %64 = arith.truncf %19 : vector<1x32xf32> to vector<1x32xbf16>
    %cst_31 = arith.constant dense<0.000000e+00> : vector<1x128xf32>
    %65 = tpu.matmul %64, %15, %cst_31 {dimension_numbers = #tpu.dot_dimension_numbers<[1], [0], [0], [1], [0, 0, 1, 1], [], []>} : vector<1x32xbf16>, vector<32x128xbf16>, vector<1x128xf32> -> vector<1x128xf32>
    %66 = arith.addf %63, %65 : vector<1x128xf32>
    %67 = arith.addf %66, %16 : vector<1x128xf32>
    %68 = vector.extract_strided_slice %67 {offsets = [0, 0], sizes = [1, 96], strides = [1, 1]} : vector<1x128xf32> to vector<1x96xf32>
    %69 = arith.negf %68 : vector<1x96xf32>
    %70 = math.exp %69 : vector<1x96xf32>
    %cst_32 = arith.constant 1.000000e+00 : f32
    %71 = vector.broadcast %cst_32 : f32 to vector<1x96xf32>
    %72 = arith.addf %71, %70 : vector<1x96xf32>
    %73 = arith.divf %71, %72 : vector<1x96xf32>
    %74 = vector.extract_strided_slice %73 {offsets = [0, 0], sizes = [1, 32], strides = [1, 1]} : vector<1x96xf32> to vector<1x32xf32>
    %75 = vector.extract_strided_slice %73 {offsets = [0, 32], sizes = [1, 32], strides = [1, 1]} : vector<1x96xf32> to vector<1x32xf32>
    %76 = vector.extract_strided_slice %73 {offsets = [0, 64], sizes = [1, 32], strides = [1, 1]} : vector<1x96xf32> to vector<1x32xf32>
    %77 = vector.extract_strided_slice %67 {offsets = [0, 96], sizes = [1, 32], strides = [1, 1]} : vector<1x128xf32> to vector<1x32xf32>
    %78 = math.tanh %77 : vector<1x32xf32>
    %79 = arith.mulf %75, %20 : vector<1x32xf32>
    %80 = arith.mulf %74, %78 : vector<1x32xf32>
    %81 = arith.addf %79, %80 : vector<1x32xf32>
    %82 = math.tanh %81 : vector<1x32xf32>
    %83 = arith.mulf %76, %82 : vector<1x32xf32>
    %84 = arith.cmpi slt, %c1_i32, %12 : i32
    %c1_i32_33 = arith.constant 1 : i32
    %85 = arith.subi %c1_i32, %c1_i32_33 : i32
    %86 = arith.cmpi slt, %85, %12 : i32
    %87 = arith.select %84, %62, %40 : vector<1x32xf32>
    %88 = arith.select %84, %60, %38 : vector<1x32xf32>
    %89 = arith.select %86, %83, %19 : vector<1x32xf32>
    %90 = arith.select %86, %81, %20 : vector<1x32xf32>
    %c2_i32 = arith.constant 2 : i32
    %91 = arith.truncf %87 : vector<1x32xf32> to vector<1x32xbf16>
    %c7_i32_34 = arith.constant 7 : i32
    %92 = arith.minsi %c2_i32, %c7_i32_34 : i32
    %93 = arith.index_cast %92 : i32 to index
    %c0_35 = arith.constant 0 : index
    %94 = vector.load %arg11[%93, %c0_35] : memref<8x128xf32, #tpu.memory_space<vmem>>, vector<1x128xf32>
    %cst_36 = arith.constant dense<0.000000e+00> : vector<1x128xf32>
    %95 = tpu.matmul %91, %13, %cst_36 {dimension_numbers = #tpu.dot_dimension_numbers<[1], [0], [0], [1], [0, 0, 1, 1], [], []>} : vector<1x32xbf16>, vector<32x128xbf16>, vector<1x128xf32> -> vector<1x128xf32>
    %96 = arith.addf %94, %95 : vector<1x128xf32>
    %97 = vector.extract_strided_slice %96 {offsets = [0, 0], sizes = [1, 96], strides = [1, 1]} : vector<1x128xf32> to vector<1x96xf32>
    %98 = arith.negf %97 : vector<1x96xf32>
    %99 = math.exp %98 : vector<1x96xf32>
    %cst_37 = arith.constant 1.000000e+00 : f32
    %100 = vector.broadcast %cst_37 : f32 to vector<1x96xf32>
    %101 = arith.addf %100, %99 : vector<1x96xf32>
    %102 = arith.divf %100, %101 : vector<1x96xf32>
    %103 = vector.extract_strided_slice %102 {offsets = [0, 0], sizes = [1, 32], strides = [1, 1]} : vector<1x96xf32> to vector<1x32xf32>
    %104 = vector.extract_strided_slice %102 {offsets = [0, 32], sizes = [1, 32], strides = [1, 1]} : vector<1x96xf32> to vector<1x32xf32>
    %105 = vector.extract_strided_slice %102 {offsets = [0, 64], sizes = [1, 32], strides = [1, 1]} : vector<1x96xf32> to vector<1x32xf32>
    %106 = vector.extract_strided_slice %96 {offsets = [0, 96], sizes = [1, 32], strides = [1, 1]} : vector<1x128xf32> to vector<1x32xf32>
    %107 = math.tanh %106 : vector<1x32xf32>
    %108 = arith.mulf %104, %88 : vector<1x32xf32>
    %109 = arith.mulf %103, %107 : vector<1x32xf32>
    %110 = arith.addf %108, %109 : vector<1x32xf32>
    %111 = math.tanh %110 : vector<1x32xf32>
    %112 = arith.mulf %105, %111 : vector<1x32xf32>
    %cst_38 = arith.constant dense<0.000000e+00> : vector<1x128xf32>
    %113 = tpu.matmul %91, %14, %cst_38 {dimension_numbers = #tpu.dot_dimension_numbers<[1], [0], [0], [1], [0, 0, 1, 1], [], []>} : vector<1x32xbf16>, vector<32x128xbf16>, vector<1x128xf32> -> vector<1x128xf32>
    %114 = arith.truncf %89 : vector<1x32xf32> to vector<1x32xbf16>
    %cst_39 = arith.constant dense<0.000000e+00> : vector<1x128xf32>
    %115 = tpu.matmul %114, %15, %cst_39 {dimension_numbers = #tpu.dot_dimension_numbers<[1], [0], [0], [1], [0, 0, 1, 1], [], []>} : vector<1x32xbf16>, vector<32x128xbf16>, vector<1x128xf32> -> vector<1x128xf32>
    %116 = arith.addf %113, %115 : vector<1x128xf32>
    %117 = arith.addf %116, %16 : vector<1x128xf32>
    %118 = vector.extract_strided_slice %117 {offsets = [0, 0], sizes = [1, 96], strides = [1, 1]} : vector<1x128xf32> to vector<1x96xf32>
    %119 = arith.negf %118 : vector<1x96xf32>
    %120 = math.exp %119 : vector<1x96xf32>
    %cst_40 = arith.constant 1.000000e+00 : f32
    %121 = vector.broadcast %cst_40 : f32 to vector<1x96xf32>
    %122 = arith.addf %121, %120 : vector<1x96xf32>
    %123 = arith.divf %121, %122 : vector<1x96xf32>
    %124 = vector.extract_strided_slice %123 {offsets = [0, 0], sizes = [1, 32], strides = [1, 1]} : vector<1x96xf32> to vector<1x32xf32>
    %125 = vector.extract_strided_slice %123 {offsets = [0, 32], sizes = [1, 32], strides = [1, 1]} : vector<1x96xf32> to vector<1x32xf32>
    %126 = vector.extract_strided_slice %123 {offsets = [0, 64], sizes = [1, 32], strides = [1, 1]} : vector<1x96xf32> to vector<1x32xf32>
    %127 = vector.extract_strided_slice %117 {offsets = [0, 96], sizes = [1, 32], strides = [1, 1]} : vector<1x128xf32> to vector<1x32xf32>
    %128 = math.tanh %127 : vector<1x32xf32>
    %129 = arith.mulf %125, %90 : vector<1x32xf32>
    %130 = arith.mulf %124, %128 : vector<1x32xf32>
    %131 = arith.addf %129, %130 : vector<1x32xf32>
    %132 = math.tanh %131 : vector<1x32xf32>
    %133 = arith.mulf %126, %132 : vector<1x32xf32>
    %134 = arith.cmpi slt, %c2_i32, %12 : i32
    %c1_i32_41 = arith.constant 1 : i32
    %135 = arith.subi %c2_i32, %c1_i32_41 : i32
    %136 = arith.cmpi slt, %135, %12 : i32
    %137 = arith.select %134, %112, %87 : vector<1x32xf32>
    %138 = arith.select %134, %110, %88 : vector<1x32xf32>
    %139 = arith.select %136, %133, %89 : vector<1x32xf32>
    %140 = arith.select %136, %131, %90 : vector<1x32xf32>
    %c3_i32 = arith.constant 3 : i32
    %141 = arith.truncf %137 : vector<1x32xf32> to vector<1x32xbf16>
    %c7_i32_42 = arith.constant 7 : i32
    %142 = arith.minsi %c3_i32, %c7_i32_42 : i32
    %143 = arith.index_cast %142 : i32 to index
    %c0_43 = arith.constant 0 : index
    %144 = vector.load %arg11[%143, %c0_43] : memref<8x128xf32, #tpu.memory_space<vmem>>, vector<1x128xf32>
    %cst_44 = arith.constant dense<0.000000e+00> : vector<1x128xf32>
    %145 = tpu.matmul %141, %13, %cst_44 {dimension_numbers = #tpu.dot_dimension_numbers<[1], [0], [0], [1], [0, 0, 1, 1], [], []>} : vector<1x32xbf16>, vector<32x128xbf16>, vector<1x128xf32> -> vector<1x128xf32>
    %146 = arith.addf %144, %145 : vector<1x128xf32>
    %147 = vector.extract_strided_slice %146 {offsets = [0, 0], sizes = [1, 96], strides = [1, 1]} : vector<1x128xf32> to vector<1x96xf32>
    %148 = arith.negf %147 : vector<1x96xf32>
    %149 = math.exp %148 : vector<1x96xf32>
    %cst_45 = arith.constant 1.000000e+00 : f32
    %150 = vector.broadcast %cst_45 : f32 to vector<1x96xf32>
    %151 = arith.addf %150, %149 : vector<1x96xf32>
    %152 = arith.divf %150, %151 : vector<1x96xf32>
    %153 = vector.extract_strided_slice %152 {offsets = [0, 0], sizes = [1, 32], strides = [1, 1]} : vector<1x96xf32> to vector<1x32xf32>
    %154 = vector.extract_strided_slice %152 {offsets = [0, 32], sizes = [1, 32], strides = [1, 1]} : vector<1x96xf32> to vector<1x32xf32>
    %155 = vector.extract_strided_slice %152 {offsets = [0, 64], sizes = [1, 32], strides = [1, 1]} : vector<1x96xf32> to vector<1x32xf32>
    %156 = vector.extract_strided_slice %146 {offsets = [0, 96], sizes = [1, 32], strides = [1, 1]} : vector<1x128xf32> to vector<1x32xf32>
    %157 = math.tanh %156 : vector<1x32xf32>
    %158 = arith.mulf %154, %138 : vector<1x32xf32>
    %159 = arith.mulf %153, %157 : vector<1x32xf32>
    %160 = arith.addf %158, %159 : vector<1x32xf32>
    %161 = math.tanh %160 : vector<1x32xf32>
    %162 = arith.mulf %155, %161 : vector<1x32xf32>
    %cst_46 = arith.constant dense<0.000000e+00> : vector<1x128xf32>
    %163 = tpu.matmul %141, %14, %cst_46 {dimension_numbers = #tpu.dot_dimension_numbers<[1], [0], [0], [1], [0, 0, 1, 1], [], []>} : vector<1x32xbf16>, vector<32x128xbf16>, vector<1x128xf32> -> vector<1x128xf32>
    %164 = arith.truncf %139 : vector<1x32xf32> to vector<1x32xbf16>
    %cst_47 = arith.constant dense<0.000000e+00> : vector<1x128xf32>
    %165 = tpu.matmul %164, %15, %cst_47 {dimension_numbers = #tpu.dot_dimension_numbers<[1], [0], [0], [1], [0, 0, 1, 1], [], []>} : vector<1x32xbf16>, vector<32x128xbf16>, vector<1x128xf32> -> vector<1x128xf32>
    %166 = arith.addf %163, %165 : vector<1x128xf32>
    %167 = arith.addf %166, %16 : vector<1x128xf32>
    %168 = vector.extract_strided_slice %167 {offsets = [0, 0], sizes = [1, 96], strides = [1, 1]} : vector<1x128xf32> to vector<1x96xf32>
    %169 = arith.negf %168 : vector<1x96xf32>
    %170 = math.exp %169 : vector<1x96xf32>
    %cst_48 = arith.constant 1.000000e+00 : f32
    %171 = vector.broadcast %cst_48 : f32 to vector<1x96xf32>
    %172 = arith.addf %171, %170 : vector<1x96xf32>
    %173 = arith.divf %171, %172 : vector<1x96xf32>
    %174 = vector.extract_strided_slice %173 {offsets = [0, 0], sizes = [1, 32], strides = [1, 1]} : vector<1x96xf32> to vector<1x32xf32>
    %175 = vector.extract_strided_slice %173 {offsets = [0, 32], sizes = [1, 32], strides = [1, 1]} : vector<1x96xf32> to vector<1x32xf32>
    %176 = vector.extract_strided_slice %173 {offsets = [0, 64], sizes = [1, 32], strides = [1, 1]} : vector<1x96xf32> to vector<1x32xf32>
    %177 = vector.extract_strided_slice %167 {offsets = [0, 96], sizes = [1, 32], strides = [1, 1]} : vector<1x128xf32> to vector<1x32xf32>
    %178 = math.tanh %177 : vector<1x32xf32>
    %179 = arith.mulf %175, %140 : vector<1x32xf32>
    %180 = arith.mulf %174, %178 : vector<1x32xf32>
    %181 = arith.addf %179, %180 : vector<1x32xf32>
    %182 = math.tanh %181 : vector<1x32xf32>
    %183 = arith.mulf %176, %182 : vector<1x32xf32>
    %184 = arith.cmpi slt, %c3_i32, %12 : i32
    %c1_i32_49 = arith.constant 1 : i32
    %185 = arith.subi %c3_i32, %c1_i32_49 : i32
    %186 = arith.cmpi slt, %185, %12 : i32
    %187 = arith.select %184, %162, %137 : vector<1x32xf32>
    %188 = arith.select %184, %160, %138 : vector<1x32xf32>
    %189 = arith.select %186, %183, %139 : vector<1x32xf32>
    %190 = arith.select %186, %181, %140 : vector<1x32xf32>
    %c4_i32 = arith.constant 4 : i32
    %191 = arith.truncf %187 : vector<1x32xf32> to vector<1x32xbf16>
    %c7_i32_50 = arith.constant 7 : i32
    %192 = arith.minsi %c4_i32, %c7_i32_50 : i32
    %193 = arith.index_cast %192 : i32 to index
    %c0_51 = arith.constant 0 : index
    %194 = vector.load %arg11[%193, %c0_51] : memref<8x128xf32, #tpu.memory_space<vmem>>, vector<1x128xf32>
    %cst_52 = arith.constant dense<0.000000e+00> : vector<1x128xf32>
    %195 = tpu.matmul %191, %13, %cst_52 {dimension_numbers = #tpu.dot_dimension_numbers<[1], [0], [0], [1], [0, 0, 1, 1], [], []>} : vector<1x32xbf16>, vector<32x128xbf16>, vector<1x128xf32> -> vector<1x128xf32>
    %196 = arith.addf %194, %195 : vector<1x128xf32>
    %197 = vector.extract_strided_slice %196 {offsets = [0, 0], sizes = [1, 96], strides = [1, 1]} : vector<1x128xf32> to vector<1x96xf32>
    %198 = arith.negf %197 : vector<1x96xf32>
    %199 = math.exp %198 : vector<1x96xf32>
    %cst_53 = arith.constant 1.000000e+00 : f32
    %200 = vector.broadcast %cst_53 : f32 to vector<1x96xf32>
    %201 = arith.addf %200, %199 : vector<1x96xf32>
    %202 = arith.divf %200, %201 : vector<1x96xf32>
    %203 = vector.extract_strided_slice %202 {offsets = [0, 0], sizes = [1, 32], strides = [1, 1]} : vector<1x96xf32> to vector<1x32xf32>
    %204 = vector.extract_strided_slice %202 {offsets = [0, 32], sizes = [1, 32], strides = [1, 1]} : vector<1x96xf32> to vector<1x32xf32>
    %205 = vector.extract_strided_slice %202 {offsets = [0, 64], sizes = [1, 32], strides = [1, 1]} : vector<1x96xf32> to vector<1x32xf32>
    %206 = vector.extract_strided_slice %196 {offsets = [0, 96], sizes = [1, 32], strides = [1, 1]} : vector<1x128xf32> to vector<1x32xf32>
    %207 = math.tanh %206 : vector<1x32xf32>
    %208 = arith.mulf %204, %188 : vector<1x32xf32>
    %209 = arith.mulf %203, %207 : vector<1x32xf32>
    %210 = arith.addf %208, %209 : vector<1x32xf32>
    %211 = math.tanh %210 : vector<1x32xf32>
    %212 = arith.mulf %205, %211 : vector<1x32xf32>
    %cst_54 = arith.constant dense<0.000000e+00> : vector<1x128xf32>
    %213 = tpu.matmul %191, %14, %cst_54 {dimension_numbers = #tpu.dot_dimension_numbers<[1], [0], [0], [1], [0, 0, 1, 1], [], []>} : vector<1x32xbf16>, vector<32x128xbf16>, vector<1x128xf32> -> vector<1x128xf32>
    %214 = arith.truncf %189 : vector<1x32xf32> to vector<1x32xbf16>
    %cst_55 = arith.constant dense<0.000000e+00> : vector<1x128xf32>
    %215 = tpu.matmul %214, %15, %cst_55 {dimension_numbers = #tpu.dot_dimension_numbers<[1], [0], [0], [1], [0, 0, 1, 1], [], []>} : vector<1x32xbf16>, vector<32x128xbf16>, vector<1x128xf32> -> vector<1x128xf32>
    %216 = arith.addf %213, %215 : vector<1x128xf32>
    %217 = arith.addf %216, %16 : vector<1x128xf32>
    %218 = vector.extract_strided_slice %217 {offsets = [0, 0], sizes = [1, 96], strides = [1, 1]} : vector<1x128xf32> to vector<1x96xf32>
    %219 = arith.negf %218 : vector<1x96xf32>
    %220 = math.exp %219 : vector<1x96xf32>
    %cst_56 = arith.constant 1.000000e+00 : f32
    %221 = vector.broadcast %cst_56 : f32 to vector<1x96xf32>
    %222 = arith.addf %221, %220 : vector<1x96xf32>
    %223 = arith.divf %221, %222 : vector<1x96xf32>
    %224 = vector.extract_strided_slice %223 {offsets = [0, 0], sizes = [1, 32], strides = [1, 1]} : vector<1x96xf32> to vector<1x32xf32>
    %225 = vector.extract_strided_slice %223 {offsets = [0, 32], sizes = [1, 32], strides = [1, 1]} : vector<1x96xf32> to vector<1x32xf32>
    %226 = vector.extract_strided_slice %223 {offsets = [0, 64], sizes = [1, 32], strides = [1, 1]} : vector<1x96xf32> to vector<1x32xf32>
    %227 = vector.extract_strided_slice %217 {offsets = [0, 96], sizes = [1, 32], strides = [1, 1]} : vector<1x128xf32> to vector<1x32xf32>
    %228 = math.tanh %227 : vector<1x32xf32>
    %229 = arith.mulf %225, %190 : vector<1x32xf32>
    %230 = arith.mulf %224, %228 : vector<1x32xf32>
    %231 = arith.addf %229, %230 : vector<1x32xf32>
    %232 = math.tanh %231 : vector<1x32xf32>
    %233 = arith.mulf %226, %232 : vector<1x32xf32>
    %234 = arith.cmpi slt, %c4_i32, %12 : i32
    %c1_i32_57 = arith.constant 1 : i32
    %235 = arith.subi %c4_i32, %c1_i32_57 : i32
    %236 = arith.cmpi slt, %235, %12 : i32
    %237 = arith.select %234, %212, %187 : vector<1x32xf32>
    %238 = arith.select %234, %210, %188 : vector<1x32xf32>
    %239 = arith.select %236, %233, %189 : vector<1x32xf32>
    %240 = arith.select %236, %231, %190 : vector<1x32xf32>
    %c5_i32 = arith.constant 5 : i32
    %241 = arith.truncf %237 : vector<1x32xf32> to vector<1x32xbf16>
    %c7_i32_58 = arith.constant 7 : i32
    %242 = arith.minsi %c5_i32, %c7_i32_58 : i32
    %243 = arith.index_cast %242 : i32 to index
    %c0_59 = arith.constant 0 : index
    %244 = vector.load %arg11[%243, %c0_59] : memref<8x128xf32, #tpu.memory_space<vmem>>, vector<1x128xf32>
    %cst_60 = arith.constant dense<0.000000e+00> : vector<1x128xf32>
    %245 = tpu.matmul %241, %13, %cst_60 {dimension_numbers = #tpu.dot_dimension_numbers<[1], [0], [0], [1], [0, 0, 1, 1], [], []>} : vector<1x32xbf16>, vector<32x128xbf16>, vector<1x128xf32> -> vector<1x128xf32>
    %246 = arith.addf %244, %245 : vector<1x128xf32>
    %247 = vector.extract_strided_slice %246 {offsets = [0, 0], sizes = [1, 96], strides = [1, 1]} : vector<1x128xf32> to vector<1x96xf32>
    %248 = arith.negf %247 : vector<1x96xf32>
    %249 = math.exp %248 : vector<1x96xf32>
    %cst_61 = arith.constant 1.000000e+00 : f32
    %250 = vector.broadcast %cst_61 : f32 to vector<1x96xf32>
    %251 = arith.addf %250, %249 : vector<1x96xf32>
    %252 = arith.divf %250, %251 : vector<1x96xf32>
    %253 = vector.extract_strided_slice %252 {offsets = [0, 0], sizes = [1, 32], strides = [1, 1]} : vector<1x96xf32> to vector<1x32xf32>
    %254 = vector.extract_strided_slice %252 {offsets = [0, 32], sizes = [1, 32], strides = [1, 1]} : vector<1x96xf32> to vector<1x32xf32>
    %255 = vector.extract_strided_slice %252 {offsets = [0, 64], sizes = [1, 32], strides = [1, 1]} : vector<1x96xf32> to vector<1x32xf32>
    %256 = vector.extract_strided_slice %246 {offsets = [0, 96], sizes = [1, 32], strides = [1, 1]} : vector<1x128xf32> to vector<1x32xf32>
    %257 = math.tanh %256 : vector<1x32xf32>
    %258 = arith.mulf %254, %238 : vector<1x32xf32>
    %259 = arith.mulf %253, %257 : vector<1x32xf32>
    %260 = arith.addf %258, %259 : vector<1x32xf32>
    %261 = math.tanh %260 : vector<1x32xf32>
    %262 = arith.mulf %255, %261 : vector<1x32xf32>
    %cst_62 = arith.constant dense<0.000000e+00> : vector<1x128xf32>
    %263 = tpu.matmul %241, %14, %cst_62 {dimension_numbers = #tpu.dot_dimension_numbers<[1], [0], [0], [1], [0, 0, 1, 1], [], []>} : vector<1x32xbf16>, vector<32x128xbf16>, vector<1x128xf32> -> vector<1x128xf32>
    %264 = arith.truncf %239 : vector<1x32xf32> to vector<1x32xbf16>
    %cst_63 = arith.constant dense<0.000000e+00> : vector<1x128xf32>
    %265 = tpu.matmul %264, %15, %cst_63 {dimension_numbers = #tpu.dot_dimension_numbers<[1], [0], [0], [1], [0, 0, 1, 1], [], []>} : vector<1x32xbf16>, vector<32x128xbf16>, vector<1x128xf32> -> vector<1x128xf32>
    %266 = arith.addf %263, %265 : vector<1x128xf32>
    %267 = arith.addf %266, %16 : vector<1x128xf32>
    %268 = vector.extract_strided_slice %267 {offsets = [0, 0], sizes = [1, 96], strides = [1, 1]} : vector<1x128xf32> to vector<1x96xf32>
    %269 = arith.negf %268 : vector<1x96xf32>
    %270 = math.exp %269 : vector<1x96xf32>
    %cst_64 = arith.constant 1.000000e+00 : f32
    %271 = vector.broadcast %cst_64 : f32 to vector<1x96xf32>
    %272 = arith.addf %271, %270 : vector<1x96xf32>
    %273 = arith.divf %271, %272 : vector<1x96xf32>
    %274 = vector.extract_strided_slice %273 {offsets = [0, 0], sizes = [1, 32], strides = [1, 1]} : vector<1x96xf32> to vector<1x32xf32>
    %275 = vector.extract_strided_slice %273 {offsets = [0, 32], sizes = [1, 32], strides = [1, 1]} : vector<1x96xf32> to vector<1x32xf32>
    %276 = vector.extract_strided_slice %273 {offsets = [0, 64], sizes = [1, 32], strides = [1, 1]} : vector<1x96xf32> to vector<1x32xf32>
    %277 = vector.extract_strided_slice %267 {offsets = [0, 96], sizes = [1, 32], strides = [1, 1]} : vector<1x128xf32> to vector<1x32xf32>
    %278 = math.tanh %277 : vector<1x32xf32>
    %279 = arith.mulf %275, %240 : vector<1x32xf32>
    %280 = arith.mulf %274, %278 : vector<1x32xf32>
    %281 = arith.addf %279, %280 : vector<1x32xf32>
    %282 = math.tanh %281 : vector<1x32xf32>
    %283 = arith.mulf %276, %282 : vector<1x32xf32>
    %284 = arith.cmpi slt, %c5_i32, %12 : i32
    %c1_i32_65 = arith.constant 1 : i32
    %285 = arith.subi %c5_i32, %c1_i32_65 : i32
    %286 = arith.cmpi slt, %285, %12 : i32
    %287 = arith.select %284, %262, %237 : vector<1x32xf32>
    %288 = arith.select %284, %260, %238 : vector<1x32xf32>
    %289 = arith.select %286, %283, %239 : vector<1x32xf32>
    %290 = arith.select %286, %281, %240 : vector<1x32xf32>
    %c6_i32 = arith.constant 6 : i32
    %291 = arith.truncf %287 : vector<1x32xf32> to vector<1x32xbf16>
    %c7_i32_66 = arith.constant 7 : i32
    %292 = arith.minsi %c6_i32, %c7_i32_66 : i32
    %293 = arith.index_cast %292 : i32 to index
    %c0_67 = arith.constant 0 : index
    %294 = vector.load %arg11[%293, %c0_67] : memref<8x128xf32, #tpu.memory_space<vmem>>, vector<1x128xf32>
    %cst_68 = arith.constant dense<0.000000e+00> : vector<1x128xf32>
    %295 = tpu.matmul %291, %13, %cst_68 {dimension_numbers = #tpu.dot_dimension_numbers<[1], [0], [0], [1], [0, 0, 1, 1], [], []>} : vector<1x32xbf16>, vector<32x128xbf16>, vector<1x128xf32> -> vector<1x128xf32>
    %296 = arith.addf %294, %295 : vector<1x128xf32>
    %297 = vector.extract_strided_slice %296 {offsets = [0, 0], sizes = [1, 96], strides = [1, 1]} : vector<1x128xf32> to vector<1x96xf32>
    %298 = arith.negf %297 : vector<1x96xf32>
    %299 = math.exp %298 : vector<1x96xf32>
    %cst_69 = arith.constant 1.000000e+00 : f32
    %300 = vector.broadcast %cst_69 : f32 to vector<1x96xf32>
    %301 = arith.addf %300, %299 : vector<1x96xf32>
    %302 = arith.divf %300, %301 : vector<1x96xf32>
    %303 = vector.extract_strided_slice %302 {offsets = [0, 0], sizes = [1, 32], strides = [1, 1]} : vector<1x96xf32> to vector<1x32xf32>
    %304 = vector.extract_strided_slice %302 {offsets = [0, 32], sizes = [1, 32], strides = [1, 1]} : vector<1x96xf32> to vector<1x32xf32>
    %305 = vector.extract_strided_slice %302 {offsets = [0, 64], sizes = [1, 32], strides = [1, 1]} : vector<1x96xf32> to vector<1x32xf32>
    %306 = vector.extract_strided_slice %296 {offsets = [0, 96], sizes = [1, 32], strides = [1, 1]} : vector<1x128xf32> to vector<1x32xf32>
    %307 = math.tanh %306 : vector<1x32xf32>
    %308 = arith.mulf %304, %288 : vector<1x32xf32>
    %309 = arith.mulf %303, %307 : vector<1x32xf32>
    %310 = arith.addf %308, %309 : vector<1x32xf32>
    %311 = math.tanh %310 : vector<1x32xf32>
    %312 = arith.mulf %305, %311 : vector<1x32xf32>
    %cst_70 = arith.constant dense<0.000000e+00> : vector<1x128xf32>
    %313 = tpu.matmul %291, %14, %cst_70 {dimension_numbers = #tpu.dot_dimension_numbers<[1], [0], [0], [1], [0, 0, 1, 1], [], []>} : vector<1x32xbf16>, vector<32x128xbf16>, vector<1x128xf32> -> vector<1x128xf32>
    %314 = arith.truncf %289 : vector<1x32xf32> to vector<1x32xbf16>
    %cst_71 = arith.constant dense<0.000000e+00> : vector<1x128xf32>
    %315 = tpu.matmul %314, %15, %cst_71 {dimension_numbers = #tpu.dot_dimension_numbers<[1], [0], [0], [1], [0, 0, 1, 1], [], []>} : vector<1x32xbf16>, vector<32x128xbf16>, vector<1x128xf32> -> vector<1x128xf32>
    %316 = arith.addf %313, %315 : vector<1x128xf32>
    %317 = arith.addf %316, %16 : vector<1x128xf32>
    %318 = vector.extract_strided_slice %317 {offsets = [0, 0], sizes = [1, 96], strides = [1, 1]} : vector<1x128xf32> to vector<1x96xf32>
    %319 = arith.negf %318 : vector<1x96xf32>
    %320 = math.exp %319 : vector<1x96xf32>
    %cst_72 = arith.constant 1.000000e+00 : f32
    %321 = vector.broadcast %cst_72 : f32 to vector<1x96xf32>
    %322 = arith.addf %321, %320 : vector<1x96xf32>
    %323 = arith.divf %321, %322 : vector<1x96xf32>
    %324 = vector.extract_strided_slice %323 {offsets = [0, 0], sizes = [1, 32], strides = [1, 1]} : vector<1x96xf32> to vector<1x32xf32>
    %325 = vector.extract_strided_slice %323 {offsets = [0, 32], sizes = [1, 32], strides = [1, 1]} : vector<1x96xf32> to vector<1x32xf32>
    %326 = vector.extract_strided_slice %323 {offsets = [0, 64], sizes = [1, 32], strides = [1, 1]} : vector<1x96xf32> to vector<1x32xf32>
    %327 = vector.extract_strided_slice %317 {offsets = [0, 96], sizes = [1, 32], strides = [1, 1]} : vector<1x128xf32> to vector<1x32xf32>
    %328 = math.tanh %327 : vector<1x32xf32>
    %329 = arith.mulf %325, %290 : vector<1x32xf32>
    %330 = arith.mulf %324, %328 : vector<1x32xf32>
    %331 = arith.addf %329, %330 : vector<1x32xf32>
    %332 = math.tanh %331 : vector<1x32xf32>
    %333 = arith.mulf %326, %332 : vector<1x32xf32>
    %334 = arith.cmpi slt, %c6_i32, %12 : i32
    %c1_i32_73 = arith.constant 1 : i32
    %335 = arith.subi %c6_i32, %c1_i32_73 : i32
    %336 = arith.cmpi slt, %335, %12 : i32
    %337 = arith.select %334, %312, %287 : vector<1x32xf32>
    %338 = arith.select %334, %310, %288 : vector<1x32xf32>
    %339 = arith.select %336, %333, %289 : vector<1x32xf32>
    %340 = arith.select %336, %331, %290 : vector<1x32xf32>
    %c7_i32_74 = arith.constant 7 : i32
    %341 = arith.truncf %337 : vector<1x32xf32> to vector<1x32xbf16>
    %c7_i32_75 = arith.constant 7 : i32
    %342 = arith.minsi %c7_i32_74, %c7_i32_75 : i32
    %343 = arith.index_cast %342 : i32 to index
    %c0_76 = arith.constant 0 : index
    %344 = vector.load %arg11[%343, %c0_76] : memref<8x128xf32, #tpu.memory_space<vmem>>, vector<1x128xf32>
    %cst_77 = arith.constant dense<0.000000e+00> : vector<1x128xf32>
    %345 = tpu.matmul %341, %13, %cst_77 {dimension_numbers = #tpu.dot_dimension_numbers<[1], [0], [0], [1], [0, 0, 1, 1], [], []>} : vector<1x32xbf16>, vector<32x128xbf16>, vector<1x128xf32> -> vector<1x128xf32>
    %346 = arith.addf %344, %345 : vector<1x128xf32>
    %347 = vector.extract_strided_slice %346 {offsets = [0, 0], sizes = [1, 96], strides = [1, 1]} : vector<1x128xf32> to vector<1x96xf32>
    %348 = arith.negf %347 : vector<1x96xf32>
    %349 = math.exp %348 : vector<1x96xf32>
    %cst_78 = arith.constant 1.000000e+00 : f32
    %350 = vector.broadcast %cst_78 : f32 to vector<1x96xf32>
    %351 = arith.addf %350, %349 : vector<1x96xf32>
    %352 = arith.divf %350, %351 : vector<1x96xf32>
    %353 = vector.extract_strided_slice %352 {offsets = [0, 0], sizes = [1, 32], strides = [1, 1]} : vector<1x96xf32> to vector<1x32xf32>
    %354 = vector.extract_strided_slice %352 {offsets = [0, 32], sizes = [1, 32], strides = [1, 1]} : vector<1x96xf32> to vector<1x32xf32>
    %355 = vector.extract_strided_slice %352 {offsets = [0, 64], sizes = [1, 32], strides = [1, 1]} : vector<1x96xf32> to vector<1x32xf32>
    %356 = vector.extract_strided_slice %346 {offsets = [0, 96], sizes = [1, 32], strides = [1, 1]} : vector<1x128xf32> to vector<1x32xf32>
    %357 = math.tanh %356 : vector<1x32xf32>
    %358 = arith.mulf %354, %338 : vector<1x32xf32>
    %359 = arith.mulf %353, %357 : vector<1x32xf32>
    %360 = arith.addf %358, %359 : vector<1x32xf32>
    %361 = math.tanh %360 : vector<1x32xf32>
    %362 = arith.mulf %355, %361 : vector<1x32xf32>
    %cst_79 = arith.constant dense<0.000000e+00> : vector<1x128xf32>
    %363 = tpu.matmul %341, %14, %cst_79 {dimension_numbers = #tpu.dot_dimension_numbers<[1], [0], [0], [1], [0, 0, 1, 1], [], []>} : vector<1x32xbf16>, vector<32x128xbf16>, vector<1x128xf32> -> vector<1x128xf32>
    %364 = arith.truncf %339 : vector<1x32xf32> to vector<1x32xbf16>
    %cst_80 = arith.constant dense<0.000000e+00> : vector<1x128xf32>
    %365 = tpu.matmul %364, %15, %cst_80 {dimension_numbers = #tpu.dot_dimension_numbers<[1], [0], [0], [1], [0, 0, 1, 1], [], []>} : vector<1x32xbf16>, vector<32x128xbf16>, vector<1x128xf32> -> vector<1x128xf32>
    %366 = arith.addf %363, %365 : vector<1x128xf32>
    %367 = arith.addf %366, %16 : vector<1x128xf32>
    %368 = vector.extract_strided_slice %367 {offsets = [0, 0], sizes = [1, 96], strides = [1, 1]} : vector<1x128xf32> to vector<1x96xf32>
    %369 = arith.negf %368 : vector<1x96xf32>
    %370 = math.exp %369 : vector<1x96xf32>
    %cst_81 = arith.constant 1.000000e+00 : f32
    %371 = vector.broadcast %cst_81 : f32 to vector<1x96xf32>
    %372 = arith.addf %371, %370 : vector<1x96xf32>
    %373 = arith.divf %371, %372 : vector<1x96xf32>
    %374 = vector.extract_strided_slice %373 {offsets = [0, 0], sizes = [1, 32], strides = [1, 1]} : vector<1x96xf32> to vector<1x32xf32>
    %375 = vector.extract_strided_slice %373 {offsets = [0, 32], sizes = [1, 32], strides = [1, 1]} : vector<1x96xf32> to vector<1x32xf32>
    %376 = vector.extract_strided_slice %373 {offsets = [0, 64], sizes = [1, 32], strides = [1, 1]} : vector<1x96xf32> to vector<1x32xf32>
    %377 = vector.extract_strided_slice %367 {offsets = [0, 96], sizes = [1, 32], strides = [1, 1]} : vector<1x128xf32> to vector<1x32xf32>
    %378 = math.tanh %377 : vector<1x32xf32>
    %379 = arith.mulf %375, %340 : vector<1x32xf32>
    %380 = arith.mulf %374, %378 : vector<1x32xf32>
    %381 = arith.addf %379, %380 : vector<1x32xf32>
    %382 = math.tanh %381 : vector<1x32xf32>
    %383 = arith.mulf %376, %382 : vector<1x32xf32>
    %384 = arith.cmpi slt, %c7_i32_74, %12 : i32
    %c1_i32_82 = arith.constant 1 : i32
    %385 = arith.subi %c7_i32_74, %c1_i32_82 : i32
    %386 = arith.cmpi slt, %385, %12 : i32
    %387 = arith.select %384, %362, %337 : vector<1x32xf32>
    %388 = arith.select %384, %360, %338 : vector<1x32xf32>
    %389 = arith.select %386, %383, %339 : vector<1x32xf32>
    %390 = arith.select %386, %381, %340 : vector<1x32xf32>
    %c8_i32_83 = arith.constant 8 : i32
    %391 = arith.truncf %387 : vector<1x32xf32> to vector<1x32xbf16>
    %c7_i32_84 = arith.constant 7 : i32
    %392 = arith.minsi %c8_i32_83, %c7_i32_84 : i32
    %393 = arith.index_cast %392 : i32 to index
    %c0_85 = arith.constant 0 : index
    %394 = vector.load %arg11[%393, %c0_85] : memref<8x128xf32, #tpu.memory_space<vmem>>, vector<1x128xf32>
    %cst_86 = arith.constant dense<0.000000e+00> : vector<1x128xf32>
    %395 = tpu.matmul %391, %13, %cst_86 {dimension_numbers = #tpu.dot_dimension_numbers<[1], [0], [0], [1], [0, 0, 1, 1], [], []>} : vector<1x32xbf16>, vector<32x128xbf16>, vector<1x128xf32> -> vector<1x128xf32>
    %396 = arith.addf %394, %395 : vector<1x128xf32>
    %397 = vector.extract_strided_slice %396 {offsets = [0, 0], sizes = [1, 96], strides = [1, 1]} : vector<1x128xf32> to vector<1x96xf32>
    %398 = arith.negf %397 : vector<1x96xf32>
    %399 = math.exp %398 : vector<1x96xf32>
    %cst_87 = arith.constant 1.000000e+00 : f32
    %400 = vector.broadcast %cst_87 : f32 to vector<1x96xf32>
    %401 = arith.addf %400, %399 : vector<1x96xf32>
    %402 = arith.divf %400, %401 : vector<1x96xf32>
    %403 = vector.extract_strided_slice %402 {offsets = [0, 0], sizes = [1, 32], strides = [1, 1]} : vector<1x96xf32> to vector<1x32xf32>
    %404 = vector.extract_strided_slice %402 {offsets = [0, 32], sizes = [1, 32], strides = [1, 1]} : vector<1x96xf32> to vector<1x32xf32>
    %405 = vector.extract_strided_slice %402 {offsets = [0, 64], sizes = [1, 32], strides = [1, 1]} : vector<1x96xf32> to vector<1x32xf32>
    %406 = vector.extract_strided_slice %396 {offsets = [0, 96], sizes = [1, 32], strides = [1, 1]} : vector<1x128xf32> to vector<1x32xf32>
    %407 = math.tanh %406 : vector<1x32xf32>
    %408 = arith.mulf %404, %388 : vector<1x32xf32>
    %409 = arith.mulf %403, %407 : vector<1x32xf32>
    %410 = arith.addf %408, %409 : vector<1x32xf32>
    %411 = math.tanh %410 : vector<1x32xf32>
    %412 = arith.mulf %405, %411 : vector<1x32xf32>
    %cst_88 = arith.constant dense<0.000000e+00> : vector<1x128xf32>
    %413 = tpu.matmul %391, %14, %cst_88 {dimension_numbers = #tpu.dot_dimension_numbers<[1], [0], [0], [1], [0, 0, 1, 1], [], []>} : vector<1x32xbf16>, vector<32x128xbf16>, vector<1x128xf32> -> vector<1x128xf32>
    %414 = arith.truncf %389 : vector<1x32xf32> to vector<1x32xbf16>
    %cst_89 = arith.constant dense<0.000000e+00> : vector<1x128xf32>
    %415 = tpu.matmul %414, %15, %cst_89 {dimension_numbers = #tpu.dot_dimension_numbers<[1], [0], [0], [1], [0, 0, 1, 1], [], []>} : vector<1x32xbf16>, vector<32x128xbf16>, vector<1x128xf32> -> vector<1x128xf32>
    %416 = arith.addf %413, %415 : vector<1x128xf32>
    %417 = arith.addf %416, %16 : vector<1x128xf32>
    %418 = vector.extract_strided_slice %417 {offsets = [0, 0], sizes = [1, 96], strides = [1, 1]} : vector<1x128xf32> to vector<1x96xf32>
    %419 = arith.negf %418 : vector<1x96xf32>
    %420 = math.exp %419 : vector<1x96xf32>
    %cst_90 = arith.constant 1.000000e+00 : f32
    %421 = vector.broadcast %cst_90 : f32 to vector<1x96xf32>
    %422 = arith.addf %421, %420 : vector<1x96xf32>
    %423 = arith.divf %421, %422 : vector<1x96xf32>
    %424 = vector.extract_strided_slice %423 {offsets = [0, 0], sizes = [1, 32], strides = [1, 1]} : vector<1x96xf32> to vector<1x32xf32>
    %425 = vector.extract_strided_slice %423 {offsets = [0, 32], sizes = [1, 32], strides = [1, 1]} : vector<1x96xf32> to vector<1x32xf32>
    %426 = vector.extract_strided_slice %423 {offsets = [0, 64], sizes = [1, 32], strides = [1, 1]} : vector<1x96xf32> to vector<1x32xf32>
    %427 = vector.extract_strided_slice %417 {offsets = [0, 96], sizes = [1, 32], strides = [1, 1]} : vector<1x128xf32> to vector<1x32xf32>
    %428 = math.tanh %427 : vector<1x32xf32>
    %429 = arith.mulf %425, %390 : vector<1x32xf32>
    %430 = arith.mulf %424, %428 : vector<1x32xf32>
    %431 = arith.addf %429, %430 : vector<1x32xf32>
    %432 = math.tanh %431 : vector<1x32xf32>
    %433 = arith.mulf %426, %432 : vector<1x32xf32>
    %434 = arith.cmpi slt, %c8_i32_83, %12 : i32
    %c1_i32_91 = arith.constant 1 : i32
    %435 = arith.subi %c8_i32_83, %c1_i32_91 : i32
    %436 = arith.cmpi slt, %435, %12 : i32
    %437 = arith.select %434, %412, %387 : vector<1x32xf32>
    %438 = arith.select %434, %410, %388 : vector<1x32xf32>
    %439 = arith.select %436, %433, %389 : vector<1x32xf32>
    %440 = arith.select %436, %431, %390 : vector<1x32xf32>
    %c8_i32_92 = arith.constant 8 : i32
    %c0_93 = arith.constant 0 : index
    %c0_94 = arith.constant 0 : index
    %441 = vector.load %arg10[%c0_93, %c0_94] : memref<4x32xf32, #tpu.memory_space<vmem>>, vector<1x32xf32>
    tpu.vector_store %arg10[%c0_93, %c0_94], %437 {strides = array<i32>} : memref<4x32xf32, #tpu.memory_space<vmem>>, vector<1x32xf32>,
    %c1_95 = arith.constant 1 : index
    %c0_96 = arith.constant 0 : index
    %442 = vector.load %arg10[%c1_95, %c0_96] : memref<4x32xf32, #tpu.memory_space<vmem>>, vector<1x32xf32>
    tpu.vector_store %arg10[%c1_95, %c0_96], %438 {strides = array<i32>} : memref<4x32xf32, #tpu.memory_space<vmem>>, vector<1x32xf32>,
    %c2_97 = arith.constant 2 : index
    %c0_98 = arith.constant 0 : index
    %443 = vector.load %arg10[%c2_97, %c0_98] : memref<4x32xf32, #tpu.memory_space<vmem>>, vector<1x32xf32>
    tpu.vector_store %arg10[%c2_97, %c0_98], %439 {strides = array<i32>} : memref<4x32xf32, #tpu.memory_space<vmem>>, vector<1x32xf32>,
    %c3_99 = arith.constant 3 : index
    %c0_100 = arith.constant 0 : index
    %444 = vector.load %arg10[%c3_99, %c0_100] : memref<4x32xf32, #tpu.memory_space<vmem>>, vector<1x32xf32>
    tpu.vector_store %arg10[%c3_99, %c0_100], %440 {strides = array<i32>} : memref<4x32xf32, #tpu.memory_space<vmem>>, vector<1x32xf32>,
    %c0_i32_101 = arith.constant 0 : i32
    %445 = arith.cmpi eq, %arg0, %c0_i32_101 : i32
    %446 = arith.extui %445 : i1 to i32
    %c0_i32_102 = arith.constant 0 : i32
    %447 = arith.cmpi ne, %446, %c0_i32_102 : i32
    scf.if %447 {
      %c0_103 = arith.constant 0 : index
      %c0_104 = arith.constant 0 : index
      %448 = vector.load %arg8[%c0_103, %c0_104] : memref<2x32xf32, #tpu.memory_space<vmem>>, vector<1x32xf32>
      tpu.vector_store %arg8[%c0_103, %c0_104], %437 {strides = array<i32>} : memref<2x32xf32, #tpu.memory_space<vmem>>, vector<1x32xf32>,
      %c1_105 = arith.constant 1 : index
      %c0_106 = arith.constant 0 : index
      %449 = vector.load %arg8[%c1_105, %c0_106] : memref<2x32xf32, #tpu.memory_space<vmem>>, vector<1x32xf32>
      tpu.vector_store %arg8[%c1_105, %c0_106], %439 {strides = array<i32>} : memref<2x32xf32, #tpu.memory_space<vmem>>, vector<1x32xf32>,
      %c0_107 = arith.constant 0 : index
      %c0_108 = arith.constant 0 : index
      %450 = vector.load %arg9[%c0_107, %c0_108] : memref<2x32xf32, #tpu.memory_space<vmem>>, vector<1x32xf32>
      tpu.vector_store %arg9[%c0_107, %c0_108], %438 {strides = array<i32>} : memref<2x32xf32, #tpu.memory_space<vmem>>, vector<1x32xf32>,
      %c1_109 = arith.constant 1 : index
      %c0_110 = arith.constant 0 : index
      %451 = vector.load %arg9[%c1_109, %c0_110] : memref<2x32xf32, #tpu.memory_space<vmem>>, vector<1x32xf32>
      tpu.vector_store %arg9[%c1_109, %c0_110], %440 {strides = array<i32>} : memref<2x32xf32, #tpu.memory_space<vmem>>, vector<1x32xf32>,
    } else {
    }
    return
  }
  func.func @transform_0(%arg0: i32) -> (i32, i32) {
    %c0_i32 = arith.constant 0 : i32
    %c0_i32_0 = arith.constant 0 : i32
    return %arg0, %c0_i32 : i32, i32
  }
  func.func @transform_1(%arg0: i32) -> (i32, i32) {
    %c0_i32 = arith.constant 0 : i32
    %c0_i32_0 = arith.constant 0 : i32
    %c0_i32_1 = arith.constant 0 : i32
    return %c0_i32, %c0_i32_0 : i32, i32
  }
  func.func @transform_2(%arg0: i32) -> (i32, i32) {
    %c0_i32 = arith.constant 0 : i32
    %c0_i32_0 = arith.constant 0 : i32
    %c0_i32_1 = arith.constant 0 : i32
    return %c0_i32, %c0_i32_0 : i32, i32
  }
  func.func @transform_3(%arg0: i32) -> (i32, i32) {
    %c0_i32 = arith.constant 0 : i32
    %c0_i32_0 = arith.constant 0 : i32
    %c0_i32_1 = arith.constant 0 : i32
    return %c0_i32, %c0_i32_0 : i32, i32
  }
  func.func @transform_4(%arg0: i32) -> (i32, i32) {
    %c0_i32 = arith.constant 0 : i32
    %c0_i32_0 = arith.constant 0 : i32
    %c0_i32_1 = arith.constant 0 : i32
    return %c0_i32, %c0_i32_0 : i32, i32
  }
  func.func @transform_5(%arg0: i32) -> (i32, i32) {
    %c0_i32 = arith.constant 0 : i32
    %c0_i32_0 = arith.constant 0 : i32
    %c0_i32_1 = arith.constant 0 : i32
    return %c0_i32, %c0_i32_0 : i32, i32
  }
  func.func @transform_6(%arg0: i32) -> (i32, i32) {
    %c0_i32 = arith.constant 0 : i32
    %c0_i32_0 = arith.constant 0 : i32
    %c0_i32_1 = arith.constant 0 : i32
    return %c0_i32, %c0_i32_0 : i32, i32
  }
  func.func @transform_7(%arg0: i32) -> (i32, i32) {
    %c0_i32 = arith.constant 0 : i32
    %c0_i32_0 = arith.constant 0 : i32
    %c0_i32_1 = arith.constant 0 : i32
    return %c0_i32, %c0_i32_0 : i32, i32
  }
  func.func @transform_8(%arg0: i32) -> (i32, i32) {
    %c0_i32 = arith.constant 0 : i32
    %c0_i32_0 = arith.constant 0 : i32
    %c0_i32_1 = arith.constant 0 : i32
    return %c0_i32, %c0_i32_0 : i32, i32
  }
}

</mosaic_0001>

<llo_original>
// kernel: tpu_custom_call.1
$region0: #{tpu_custom_call.1}
  #allocation0 [shape = 'u32[]', space=smem, size = 0x4, offset = 0x4, fixed_abs, tag = 'smem constant byte address 0x4 - core index']
  #allocation1 [shape = 'u32[144,128]{1,0:T(1,128)}', space=vmem, size = 0x12000, scoped, tag = 'internal scratch']
  #allocation2 [shape = 'f32[4,32]{1,0:T(4,128)}', space=vmem, size = 0x800, scoped, tag = 'scratch operand']
  #allocation3 [shape = 'f32[8,128]{1,0:T(8,128)}', space=vmem, size = 0x1000, scoped, tag = 'scratch operand']
  %s0 = inlined_call_operand.hbm [shape: bf16[8,32], index: 0, kind: input, shape index: {}]
  %s1 = inlined_call_operand.hbm [shape: bf16[32,128], index: 1, kind: input, shape index: {}]
  %s2 = inlined_call_operand.hbm [shape: bf16[32,128], index: 2, kind: input, shape index: {}]
  %s3 = inlined_call_operand.vmem [shape: f32[1,128], index: 3, kind: input, shape index: {}]
  %s4 = inlined_call_operand.hbm [shape: bf16[32,128], index: 4, kind: input, shape index: {}]
  %s5 = inlined_call_operand.hbm [shape: bf16[32,128], index: 5, kind: input, shape index: {}]
  %s6 = inlined_call_operand.vmem [shape: f32[1,128], index: 6, kind: input, shape index: {}]
  %s7 = inlined_call_operand.hbm [shape: f32[2,32], index: 7, kind: output, shape index: {0}]
  %s8 = inlined_call_operand.hbm [shape: f32[2,32], index: 8, kind: output, shape index: {1}]
  %9 = xla_tuple %s7, %s8
  %s10 = sld [smem:[#allocation0]]
  $region74: #{tpu_custom_call.1} parent=0
    _
  %s12 = ssub.s32 1, %s10
  %s13 = scalar_select 0, %s12, %s10
  $region1: #{tpu_custom_call.1} parent=0
    #allocation4 [shape = 'u8[2048]{0}', space=vmem, size = 0x800, scoped, tag = 'input window, operand 0, single buffered']
    #allocation5 [shape = 's32[1]{0}', space=sflag, size = 0x4, scoped, tag = 'scoped memory for tpu_custom_call.1']
    #allocation6 [shape = 's32[1]{0}', space=sflag, size = 0x4, scoped, tag = 'scoped memory for tpu_custom_call.1']
    #allocation7 [shape = 'u8[8192]{0}', space=vmem, size = 0x2000, scoped, tag = 'input window, operand 1, single buffered']
    #allocation8 [shape = 's32[1]{0}', space=sflag, size = 0x4, scoped, tag = 'scoped memory for tpu_custom_call.1']
    #allocation9 [shape = 'u8[8192]{0}', space=vmem, size = 0x2000, scoped, tag = 'input window, operand 2, single buffered']
    #allocation10 [shape = 'u8[8192]{0}', space=vmem, size = 0x2000, scoped, tag = 'input window, operand 4, single buffered']
    #allocation11 [shape = 's32[1]{0}', space=sflag, size = 0x4, scoped, tag = 'scoped memory for tpu_custom_call.1']
    #allocation12 [shape = 'u8[8192]{0}', space=vmem, size = 0x2000, scoped, tag = 'input window, operand 5, single buffered']
    #allocation13 [shape = 'u8[1024]{0}', space=vmem, size = 0x400, scoped, tag = 'output window, operand 0, single buffered']
    #allocation14 [shape = 'u8[1024]{0}', space=vmem, size = 0x400, scoped, tag = 'output window, operand 1, single buffered']
    #allocation15 [shape = 's32[1]{0}', space=sflag, size = 0x4, scoped, tag = 'scoped memory for tpu_custom_call.1']
    %14 = vsyncpa [#allocation5], 0
    %15 = vsyncpa [#allocation8], 0
    %16 = vsyncpa [#allocation11], 0
    %17 = vsyncpa [#allocation6], 0
    %18 = vsyncpa [#allocation15], 0
    // Predicated region
    $region2: #{tpu_custom_call.1} parent=1 // pred_check
      _
    $region3: #{tpu_custom_call.1} parent=1 // pred_check_branch
      %20 = sbr.rel (0) target = $region5
    $region4: #{tpu_custom_call.1} parent=1 // pred_region
      %s22 = ssub.s32 64, 64
      %23 = vsyncadd [#allocation5], %s22
      %s25 = sshll.u32 [#allocation4], 4
      %s26 = int_to_ptr.vmem [resolvable:$true] %s25
      %28 = dma.hbm_to_vmem [thread:$0]  %s0, 64, %s26, [#allocation5]
    $region5: #{tpu_custom_call.1} parent=1 // pred_fallthru
      _
    // Predicated region
    $region6: #{tpu_custom_call.1} parent=1 // pred_check
      _
    $region7: #{tpu_custom_call.1} parent=1 // pred_check_branch
      %30 = sbr.rel (0) target = $region9
    $region8: #{tpu_custom_call.1} parent=1 // pred_region
      %s32 = ssub.s32 256, 256
      %33 = vsyncadd [#allocation8], %s32
      %s34 = sshll.u32 [#allocation7], 4
      %s35 = int_to_ptr.vmem [resolvable:$true] %s34
      %40 = dma.hbm_to_vmem [thread:$0]  %s1, 256, %s35, [#allocation8], 64, 64, 4
    $region9: #{tpu_custom_call.1} parent=1 // pred_fallthru
      _
    // Predicated region
    $region10: #{tpu_custom_call.1} parent=1 // pred_check
      _
    $region11: #{tpu_custom_call.1} parent=1 // pred_check_branch
      %42 = sbr.rel (0) target = $region13
    $region12: #{tpu_custom_call.1} parent=1 // pred_region
      %s44 = ssub.s32 256, 256
      %45 = vsyncadd [#allocation8], %s44
      %s46 = sshll.u32 [#allocation9], 4
      %s47 = int_to_ptr.vmem [resolvable:$true] %s46
      %52 = dma.hbm_to_vmem [thread:$0]  %s2, 256, %s47, [#allocation8], 64, 64, 4
    $region13: #{tpu_custom_call.1} parent=1 // pred_fallthru
      _
    // Predicated region
    $region14: #{tpu_custom_call.1} parent=1 // pred_check
      _
    $region15: #{tpu_custom_call.1} parent=1 // pred_check_branch
      %54 = sbr.rel (0) target = $region17
    $region16: #{tpu_custom_call.1} parent=1 // pred_region
      _
    $region17: #{tpu_custom_call.1} parent=1 // pred_fallthru
      _
    // Predicated region
    $region18: #{tpu_custom_call.1} parent=1 // pred_check
      _
    $region19: #{tpu_custom_call.1} parent=1 // pred_check_branch
      %56 = sbr.rel (0) target = $region21
    $region20: #{tpu_custom_call.1} parent=1 // pred_region
      %s58 = ssub.s32 256, 256
      %59 = vsyncadd [#allocation11], %s58
      %s60 = sshll.u32 [#allocation10], 4
      %s61 = int_to_ptr.vmem [resolvable:$true] %s60
      %66 = dma.hbm_to_vmem [thread:$0]  %s4, 256, %s61, [#allocation11], 64, 64, 4
    $region21: #{tpu_custom_call.1} parent=1 // pred_fallthru
      _
    // Predicated region
    $region22: #{tpu_custom_call.1} parent=1 // pred_check
      _
    $region23: #{tpu_custom_call.1} parent=1 // pred_check_branch
      %68 = sbr.rel (0) target = $region25
    $region24: #{tpu_custom_call.1} parent=1 // pred_region
      %s70 = ssub.s32 256, 256
      %71 = vsyncadd [#allocation11], %s70
      %s72 = sshll.u32 [#allocation12], 4
      %s73 = int_to_ptr.vmem [resolvable:$true] %s72
      %78 = dma.hbm_to_vmem [thread:$0]  %s5, 256, %s73, [#allocation11], 64, 64, 4
    $region25: #{tpu_custom_call.1} parent=1 // pred_fallthru
      _
    // Predicated region
    $region26: #{tpu_custom_call.1} parent=1 // pred_check
      _
    $region27: #{tpu_custom_call.1} parent=1 // pred_check_branch
      %80 = sbr.rel (0) target = $region29
    $region28: #{tpu_custom_call.1} parent=1 // pred_region
      _
    $region29: #{tpu_custom_call.1} parent=1 // pred_fallthru
      _
    // Predicated region
    $region30: #{tpu_custom_call.1} parent=1 // pred_check
      _
    $region31: #{tpu_custom_call.1} parent=1 // pred_check_branch
      %82 = sbr.rel (0) target = $region33
    $region32: #{tpu_custom_call.1} parent=1 // pred_region
      %83 = dma.done [#allocation5], 64
    $region33: #{tpu_custom_call.1} parent=1 // pred_fallthru
      _
    // Predicated region
    $region34: #{tpu_custom_call.1} parent=1 // pred_check
      _
    $region35: #{tpu_custom_call.1} parent=1 // pred_check_branch
      %85 = sbr.rel (0) target = $region37
    $region36: #{tpu_custom_call.1} parent=1 // pred_region
      %86 = dma.done [#allocation8], 256
    $region37: #{tpu_custom_call.1} parent=1 // pred_fallthru
      _
    // Predicated region
    $region38: #{tpu_custom_call.1} parent=1 // pred_check
      _
    $region39: #{tpu_custom_call.1} parent=1 // pred_check_branch
      %88 = sbr.rel (0) target = $region41
    $region40: #{tpu_custom_call.1} parent=1 // pred_region
      %89 = dma.done [#allocation8], 256
    $region41: #{tpu_custom_call.1} parent=1 // pred_fallthru
      _
    // Predicated region
    $region42: #{tpu_custom_call.1} parent=1 // pred_check
      _
    $region43: #{tpu_custom_call.1} parent=1 // pred_check_branch
      %91 = sbr.rel (0) target = $region45
    $region44: #{tpu_custom_call.1} parent=1 // pred_region
      %92 = dma.done [#allocation11], 256
    $region45: #{tpu_custom_call.1} parent=1 // pred_fallthru
      _
    // Predicated region
    $region46: #{tpu_custom_call.1} parent=1 // pred_check
      _
    $region47: #{tpu_custom_call.1} parent=1 // pred_check_branch
      %94 = sbr.rel (0) target = $region49
    $region48: #{tpu_custom_call.1} parent=1 // pred_region
      %95 = dma.done [#allocation11], 256
    $region49: #{tpu_custom_call.1} parent=1 // pred_fallthru
      _
    %p97 = scmp.eq.s32.totalorder 0, 0
    // Predicated region
    $region50: #{tpu_custom_call.1} parent=1 // pred_check
      %p98 = pneg %p97
    $region51: #{tpu_custom_call.1} parent=1 // pred_check_branch
      %100 = sbr.rel (%p98) target = $region53
    $region52: #{tpu_custom_call.1} parent=1 // pred_region
      %vm101 = vcmask 257024
      %102 = vst.msk [vmem:[#allocation2] sm:$0xf] %vm101, 0.0
    $region53: #{tpu_custom_call.1} parent=1 // pred_fallthru
      _
    %v103 = vld [vmem:[#allocation4] sm:$0xf]
    %v104 = vld [vmem:[#allocation7] sm:$0xf]
    %v105 = vld [vmem:[#allocation7 + $0x4] sm:$0xf]
    %v106 = vld [vmem:[#allocation7 + $0x8] sm:$0xf]
    %v107 = vld [vmem:[#allocation7 + $0xc] sm:$0xf]
    %v108 = vld [vmem:[%s3] sm:$0x1]
    %v110 = vlaneseq
    %v111 = vshrl.u32 %v110, 7
    %v112 = vsub.s32 0, %v111
    %v113 = vrot.slane %v108, %v112
    %v119 = vunpack.c.l.b16 %v104
    %v120 = vunpack.c.l.b16 %v105
    %v121 = vunpack.c.l.b16 %v106
    %v122 = vunpack.c.l.b16 %v107
    %v123 = vpack.c.b16 %v120, %v119
    %v124 = vpack.c.b16 %v122, %v121
    %vm127 = vcmask 261120
    %v129 = vsel %vm127, %v103, 0
    %131 = vmatprep.subr.bf16.mxu0 0
    %132 = vmatpush1.bf16.msra.mxu0 0
    %133 = vmatprep.subr.bf16.mxu0 0
    %134 = vmatpush1.bf16.msra.mxu0 0
    %135 = vmatprep.subr.bf16.mxu0 0
    %136 = vmatpush1.bf16.msra.mxu0 0
    %137 = vmatprep.subr.bf16.mxu0 0
    %138 = vmatpush1.bf16.msra.mxu0 0
    %139 = vmatprep.subr.bf16.mxu0 0
    %140 = vmatpush1.bf16.msra.mxu0 0
    %141 = vmatprep.subr.bf16.mxu0 0
    %142 = vmatpush1.bf16.msra.mxu0 0
    %143 = vmatprep.subr.bf16.mxu0 0
    %144 = vmatpush1.bf16.msra.mxu0 %v124
    %145 = vmatprep.subr.bf16.mxu0 0
    %146 = vmatpush1.bf16.msra.mxu0 %v123
    %147 = vmatprep.subr.bf16.mxu0 0
    %148 = vmatpush2.bf16.msra.mxu0 0
    %149 = vmatprep.subr.bf16.mxu0 0
    %150 = vmatpush2.bf16.msra.mxu0 0
    %151 = vmatprep.subr.bf16.mxu0 0
    %152 = vmatpush2.bf16.msra.mxu0 0
    %153 = vmatprep.subr.bf16.mxu0 0
    %154 = vmatpush2.bf16.msra.mxu0 0
    %155 = vmatprep.subr.bf16.mxu0 0
    %156 = vmatpush2.bf16.msra.mxu0 0
    %157 = vmatprep.subr.bf16.mxu0 0
    %158 = vmatpush2.bf16.msra.mxu0 0
    %159 = vmatprep.subr.bf16.mxu0 0
    %160 = vmatpush2.bf16.msra.mxu0 0
    %161 = vmatprep.subr.bf16.mxu0 0
    %162 = vmatpush2.bf16.msra.mxu0 0
    %163 = vmatprep.mubr.bf16.mxu0 0
    %164 = vmatmul.mubr.bf16.gmra.mxu0 %v129
    %v165 = vpop.f32.mrf.mxu0
    %v166 = vadd.f32 %v113, %v165
    %v167 = vpop.f32.mrf.mxu0
    %v168 = vpop.f32.mrf.mxu0
    %v169 = vpop.f32.mrf.mxu0
    %170 = vdwg.mxu0
    %171 = vst [vmem:[#allocation3] sm:$0xff] %v166
    %s172 = smul.u32 0, 8
    %s173 = ssub.s32 8, %s172
    %p174 = scmp.lt.s32.totalorder %s173, 8
    %s175 = scalar_select %p174, %s173, 8
    %v176 = vld [vmem:[#allocation9] sm:$0xf]
    %v177 = vld [vmem:[#allocation9 + $0x4] sm:$0xf]
    %v178 = vld [vmem:[#allocation9 + $0x8] sm:$0xf]
    %v179 = vld [vmem:[#allocation9 + $0xc] sm:$0xf]
    %v180 = vld [vmem:[#allocation10] sm:$0xf]
    %v181 = vld [vmem:[#allocation10 + $0x4] sm:$0xf]
    %v182 = vld [vmem:[#allocation10 + $0x8] sm:$0xf]
    %v183 = vld [vmem:[#allocation10 + $0xc] sm:$0xf]
    %v184 = vld [vmem:[#allocation12] sm:$0xf]
    %v185 = vld [vmem:[#allocation12 + $0x4] sm:$0xf]
    %v186 = vld [vmem:[#allocation12 + $0x8] sm:$0xf]
    %v187 = vld [vmem:[#allocation12 + $0xc] sm:$0xf]
    %v188 = vld [vmem:[%s6] sm:$0x1]
    %v189 = vld [vmem:[#allocation2] sm:$0x1]
    %v190 = vld [vmem:[#allocation2 + $0x1] sm:$0x1]
    %v191 = vld [vmem:[#allocation2 + $0x2] sm:$0x1]
    %v192 = vld [vmem:[#allocation2 + $0x3] sm:$0x1]
    %v193 = vld [vmem:[#allocation3] sm:$0x1]
    %v194 = vpack.c.bf16 %v189, %v189
    %v199 = vunpack.c.l.b16 %v176
    %v200 = vunpack.c.l.b16 %v177
    %v201 = vunpack.c.l.b16 %v178
    %v202 = vunpack.c.l.b16 %v179
    %v203 = vpack.c.b16 %v200, %v199
    %v204 = vpack.c.b16 %v202, %v201
    %v208 = vsel %vm127, %v194, 0
    %210 = vmatprep.subr.bf16.mxu0 0
    %211 = vmatpush1.bf16.msra.mxu0 0
    %212 = vmatprep.subr.bf16.mxu0 0
    %213 = vmatpush1.bf16.msra.mxu0 0
    %214 = vmatprep.subr.bf16.mxu0 0
    %215 = vmatpush1.bf16.msra.mxu0 0
    %216 = vmatprep.subr.bf16.mxu0 0
    %217 = vmatpush1.bf16.msra.mxu0 0
    %218 = vmatprep.subr.bf16.mxu0 0
    %219 = vmatpush1.bf16.msra.mxu0 0
    %220 = vmatprep.subr.bf16.mxu0 0
    %221 = vmatpush1.bf16.msra.mxu0 0
    %222 = vmatprep.subr.bf16.mxu0 0
    %223 = vmatpush1.bf16.msra.mxu0 %v204
    %224 = vmatprep.subr.bf16.mxu0 0
    %225 = vmatpush1.bf16.msra.mxu0 %v203
    %226 = vmatprep.subr.bf16.mxu0 0
    %227 = vmatpush2.bf16.msra.mxu0 0
    %228 = vmatprep.subr.bf16.mxu0 0
    %229 = vmatpush2.bf16.msra.mxu0 0
    %230 = vmatprep.subr.bf16.mxu0 0
    %231 = vmatpush2.bf16.msra.mxu0 0
    %232 = vmatprep.subr.bf16.mxu0 0
    %233 = vmatpush2.bf16.msra.mxu0 0
    %234 = vmatprep.subr.bf16.mxu0 0
    %235 = vmatpush2.bf16.msra.mxu0 0
    %236 = vmatprep.subr.bf16.mxu0 0
    %237 = vmatpush2.bf16.msra.mxu0 0
    %238 = vmatprep.subr.bf16.mxu0 0
    %239 = vmatpush2.bf16.msra.mxu0 0
    %240 = vmatprep.subr.bf16.mxu0 0
    %241 = vmatpush2.bf16.msra.mxu0 0
    %242 = vmatprep.mubr.bf16.mxu0 0
    %243 = vmatmul.mubr.bf16.gmra.mxu0 %v208
    %v244 = vpop.f32.mrf.mxu0
    %v245 = vadd.f32 0.0, %v244
    %v246 = vpop.f32.mrf.mxu0
    %v247 = vpop.f32.mrf.mxu0
    %v248 = vpop.f32.mrf.mxu0
    %249 = vdwg.mxu0
    %v250 = vadd.f32 %v193, %v245
    %v251 = vxor.u32 %v250, 2147483648
    %v252 = vmul.f32 %v251, 1.442695
    %v253 = vpow.pop %v252
    %v254 = vadd.f32 %v253, 1.0
    %v255 = vrcp.pop %v254
    %v256 = vmul.f32 1.0, %v255
    %v257 = vtanh.pop %v250
    %259 = vrot.lane.b32.xlu0 %v190, 32
    %v260 = vpop.permute.xlu0 %259
    %v262 = vmul.f32 %v256, %v260
    %264 = vrot.lane.b32.xlu0 %v257, 32
    %v265 = vpop.permute.xlu0 %264
    %v267 = vmul.f32 %v256, %v265
    %269 = vrot.lane.b32.xlu0 %v267, 32
    %v270 = vpop.permute.xlu0 %269
    %v272 = vadd.f32 %v262, %v270
    %v273 = vtanh.pop %v272
    %275 = vrot.lane.b32.xlu0 %v273, 32
    %v276 = vpop.permute.xlu0 %275
    %v278 = vmul.f32 %v256, %v276
    %v279 = vpack.c.bf16 %v278, %v278
    %v280 = vld [vmem:[#allocation3 + $0x1] sm:$0x1]
    %282 = vrot.lane.b32.xlu0 %v279, 64
    %v283 = vpop.permute.xlu0 %282
    %v285 = vsel %vm127, %v283, 0
    %287 = vmatprep.subr.bf16.mxu0 0
    %288 = vmatpush1.bf16.msra.mxu0 0
    %289 = vmatprep.subr.bf16.mxu0 0
    %290 = vmatpush1.bf16.msra.mxu0 0
    %291 = vmatprep.subr.bf16.mxu0 0
    %292 = vmatpush1.bf16.msra.mxu0 0
    %293 = vmatprep.subr.bf16.mxu0 0
    %294 = vmatpush1.bf16.msra.mxu0 0
    %295 = vmatprep.subr.bf16.mxu0 0
    %296 = vmatpush1.bf16.msra.mxu0 0
    %297 = vmatprep.subr.bf16.mxu0 0
    %298 = vmatpush1.bf16.msra.mxu0 0
    %299 = vmatprep.subr.bf16.mxu0 0
    %300 = vmatpush1.bf16.msra.mxu0 %v204
    %301 = vmatprep.subr.bf16.mxu0 0
    %302 = vmatpush1.bf16.msra.mxu0 %v203
    %303 = vmatprep.subr.bf16.mxu0 0
    %304 = vmatpush2.bf16.msra.mxu0 0
    %305 = vmatprep.subr.bf16.mxu0 0
    %306 = vmatpush2.bf16.msra.mxu0 0
    %307 = vmatprep.subr.bf16.mxu0 0
    %308 = vmatpush2.bf16.msra.mxu0 0
    %309 = vmatprep.subr.bf16.mxu0 0
    %310 = vmatpush2.bf16.msra.mxu0 0
    %311 = vmatprep.subr.bf16.mxu0 0
    %312 = vmatpush2.bf16.msra.mxu0 0
    %313 = vmatprep.subr.bf16.mxu0 0
    %314 = vmatpush2.bf16.msra.mxu0 0
    %315 = vmatprep.subr.bf16.mxu0 0
    %316 = vmatpush2.bf16.msra.mxu0 0
    %317 = vmatprep.subr.bf16.mxu0 0
    %318 = vmatpush2.bf16.msra.mxu0 0
    %319 = vmatprep.mubr.bf16.mxu0 0
    %320 = vmatmul.mubr.bf16.gmra.mxu0 %v285
    %v321 = vpop.f32.mrf.mxu0
    %v322 = vadd.f32 0.0, %v321
    %v323 = vpop.f32.mrf.mxu0
    %v324 = vpop.f32.mrf.mxu0
    %v325 = vpop.f32.mrf.mxu0
    %326 = vdwg.mxu0
    %v327 = vadd.f32 %v280, %v322
    %v328 = vxor.u32 %v327, 2147483648
    %v329 = vmul.f32 %v328, 1.442695
    %v330 = vpow.pop %v329
    %v331 = vadd.f32 %v330, 1.0
    %v332 = vrcp.pop %v331
    %v333 = vmul.f32 1.0, %v332
    %v334 = vtanh.pop %v327
    %v335 = vmul.f32 %v333, %v272
    %337 = vrot.lane.b32.xlu0 %v334, 32
    %v338 = vpop.permute.xlu0 %337
    %v340 = vmul.f32 %v333, %v338
    %342 = vrot.lane.b32.xlu0 %v340, 32
    %v343 = vpop.permute.xlu0 %342
    %v345 = vadd.f32 %v335, %v343
    %v346 = vtanh.pop %v345
    %348 = vrot.lane.b32.xlu0 %v346, 32
    %v349 = vpop.permute.xlu0 %348
    %v351 = vmul.f32 %v333, %v349
    %v352 = vpack.c.bf16 %v191, %v191
    %v357 = vunpack.c.l.b16 %v184
    %v358 = vunpack.c.l.b16 %v185
    %v359 = vunpack.c.l.b16 %v186
    %v360 = vunpack.c.l.b16 %v187
    %v361 = vpack.c.b16 %v358, %v357
    %v362 = vpack.c.b16 %v360, %v359
    %v366 = vsel %vm127, %v352, 0
    %368 = vmatprep.subr.bf16.mxu0 0
    %369 = vmatpush1.bf16.msra.mxu0 0
    %370 = vmatprep.subr.bf16.mxu0 0
    %371 = vmatpush1.bf16.msra.mxu0 0
    %372 = vmatprep.subr.bf16.mxu0 0
    %373 = vmatpush1.bf16.msra.mxu0 0
    %374 = vmatprep.subr.bf16.mxu0 0
    %375 = vmatpush1.bf16.msra.mxu0 0
    %376 = vmatprep.subr.bf16.mxu0 0
    %377 = vmatpush1.bf16.msra.mxu0 0
    %378 = vmatprep.subr.bf16.mxu0 0
    %379 = vmatpush1.bf16.msra.mxu0 0
    %380 = vmatprep.subr.bf16.mxu0 0
    %381 = vmatpush1.bf16.msra.mxu0 %v362
    %382 = vmatprep.subr.bf16.mxu0 0
    %383 = vmatpush1.bf16.msra.mxu0 %v361
    %384 = vmatprep.subr.bf16.mxu0 0
    %385 = vmatpush2.bf16.msra.mxu0 0
    %386 = vmatprep.subr.bf16.mxu0 0
    %387 = vmatpush2.bf16.msra.mxu0 0
    %388 = vmatprep.subr.bf16.mxu0 0
    %389 = vmatpush2.bf16.msra.mxu0 0
    %390 = vmatprep.subr.bf16.mxu0 0
    %391 = vmatpush2.bf16.msra.mxu0 0
    %392 = vmatprep.subr.bf16.mxu0 0
    %393 = vmatpush2.bf16.msra.mxu0 0
    %394 = vmatprep.subr.bf16.mxu0 0
    %395 = vmatpush2.bf16.msra.mxu0 0
    %396 = vmatprep.subr.bf16.mxu0 0
    %397 = vmatpush2.bf16.msra.mxu0 0
    %398 = vmatprep.subr.bf16.mxu0 0
    %399 = vmatpush2.bf16.msra.mxu0 0
    %400 = vmatprep.mubr.bf16.mxu0 0
    %401 = vmatmul.mubr.bf16.gmra.mxu0 %v366
    %v402 = vpop.f32.mrf.mxu0
    %v403 = vadd.f32 0.0, %v402
    %v404 = vpop.f32.mrf.mxu0
    %v405 = vpop.f32.mrf.mxu0
    %v406 = vpop.f32.mrf.mxu0
    %407 = vdwg.mxu0
    %v412 = vunpack.c.l.b16 %v180
    %v413 = vunpack.c.l.b16 %v181
    %v414 = vunpack.c.l.b16 %v182
    %v415 = vunpack.c.l.b16 %v183
    %v416 = vpack.c.b16 %v413, %v412
    %v417 = vpack.c.b16 %v415, %v414
    %420 = vmatprep.subr.bf16.mxu0 0
    %421 = vmatpush1.bf16.msra.mxu0 0
    %422 = vmatprep.subr.bf16.mxu0 0
    %423 = vmatpush1.bf16.msra.mxu0 0
    %424 = vmatprep.subr.bf16.mxu0 0
    %425 = vmatpush1.bf16.msra.mxu0 0
    %426 = vmatprep.subr.bf16.mxu0 0
    %427 = vmatpush1.bf16.msra.mxu0 0
    %428 = vmatprep.subr.bf16.mxu0 0
    %429 = vmatpush1.bf16.msra.mxu0 0
    %430 = vmatprep.subr.bf16.mxu0 0
    %431 = vmatpush1.bf16.msra.mxu0 0
    %432 = vmatprep.subr.bf16.mxu0 0
    %433 = vmatpush1.bf16.msra.mxu0 %v417
    %434 = vmatprep.subr.bf16.mxu0 0
    %435 = vmatpush1.bf16.msra.mxu0 %v416
    %436 = vmatprep.subr.bf16.mxu0 0
    %437 = vmatpush2.bf16.msra.mxu0 0
    %438 = vmatprep.subr.bf16.mxu0 0
    %439 = vmatpush2.bf16.msra.mxu0 0
    %440 = vmatprep.subr.bf16.mxu0 0
    %441 = vmatpush2.bf16.msra.mxu0 0
    %442 = vmatprep.subr.bf16.mxu0 0
    %443 = vmatpush2.bf16.msra.mxu0 0
    %444 = vmatprep.subr.bf16.mxu0 0
    %445 = vmatpush2.bf16.msra.mxu0 0
    %446 = vmatprep.subr.bf16.mxu0 0
    %447 = vmatpush2.bf16.msra.mxu0 0
    %448 = vmatprep.subr.bf16.mxu0 0
    %449 = vmatpush2.bf16.msra.mxu0 0
    %450 = vmatprep.subr.bf16.mxu0 0
    %451 = vmatpush2.bf16.msra.mxu0 0
    %452 = vmatprep.mubr.bf16.mxu0 0
    %453 = vmatmul.mubr.bf16.gmra.mxu0 %v285
    %v454 = vpop.f32.mrf.mxu0
    %v455 = vadd.f32 %v403, %v454
    %v456 = vpop.f32.mrf.mxu0
    %v457 = vpop.f32.mrf.mxu0
    %v458 = vpop.f32.mrf.mxu0
    %459 = vdwg.mxu0
    %v460 = vadd.f32 %v455, %v188
    %v461 = vxor.u32 %v460, 2147483648
    %v462 = vmul.f32 %v461, 1.442695
    %v463 = vpow.pop %v462
    %v464 = vadd.f32 %v463, 1.0
    %v465 = vrcp.pop %v464
    %v466 = vmul.f32 1.0, %v465
    %v467 = vtanh.pop %v460
    %469 = vrot.lane.b32.xlu0 %v192, 32
    %v470 = vpop.permute.xlu0 %469
    %v472 = vmul.f32 %v466, %v470
    %474 = vrot.lane.b32.xlu0 %v467, 32
    %v475 = vpop.permute.xlu0 %474
    %v477 = vmul.f32 %v466, %v475
    %479 = vrot.lane.b32.xlu0 %v477, 32
    %v480 = vpop.permute.xlu0 %479
    %v482 = vadd.f32 %v472, %v480
    %v483 = vtanh.pop %v482
    %485 = vrot.lane.b32.xlu0 %v483, 32
    %v486 = vpop.permute.xlu0 %485
    %v488 = vmul.f32 %v466, %v486
    %p489 = scmp.gt.s32.totalorder %s175, 1
    %p490 = scmp.gt.s32.totalorder %s175, 0
    %s491 = scalar_select %p489, 1, 0
    %v492 = vstv %s491
    %vm493 = vcmp.eq.s32.totalorder %v492, 1
    %v494 = vsel %vm493, %v351, %v278
    %v495 = vsel %vm493, %v345, %v272
    %s496 = scalar_select %p490, 1, 0
    %v497 = vstv %s496
    %vm498 = vcmp.eq.s32.totalorder %v497, 1
    %500 = vrot.lane.b32.xlu0 %v191, 64
    %v501 = vpop.permute.xlu0 %500
    %v503 = vsel %vm498, %v488, %v501
    %v504 = vsel %vm498, %v482, %v470
    %v505 = vpack.c.bf16 %v494, %v494
    %v506 = vld [vmem:[#allocation3 + $0x2] sm:$0x1]
    %508 = vrot.lane.b32.xlu0 %v505, 64
    %v509 = vpop.permute.xlu0 %508
    %v511 = vsel %vm127, %v509, 0
    %513 = vmatprep.subr.bf16.mxu0 0
    %514 = vmatpush1.bf16.msra.mxu0 0
    %515 = vmatprep.subr.bf16.mxu0 0
    %516 = vmatpush1.bf16.msra.mxu0 0
    %517 = vmatprep.subr.bf16.mxu0 0
    %518 = vmatpush1.bf16.msra.mxu0 0
    %519 = vmatprep.subr.bf16.mxu0 0
    %520 = vmatpush1.bf16.msra.mxu0 0
    %521 = vmatprep.subr.bf16.mxu0 0
    %522 = vmatpush1.bf16.msra.mxu0 0
    %523 = vmatprep.subr.bf16.mxu0 0
    %524 = vmatpush1.bf16.msra.mxu0 0
    %525 = vmatprep.subr.bf16.mxu0 0
    %526 = vmatpush1.bf16.msra.mxu0 %v204
    %527 = vmatprep.subr.bf16.mxu0 0
    %528 = vmatpush1.bf16.msra.mxu0 %v203
    %529 = vmatprep.subr.bf16.mxu0 0
    %530 = vmatpush2.bf16.msra.mxu0 0
    %531 = vmatprep.subr.bf16.mxu0 0
    %532 = vmatpush2.bf16.msra.mxu0 0
    %533 = vmatprep.subr.bf16.mxu0 0
    %534 = vmatpush2.bf16.msra.mxu0 0
    %535 = vmatprep.subr.bf16.mxu0 0
    %536 = vmatpush2.bf16.msra.mxu0 0
    %537 = vmatprep.subr.bf16.mxu0 0
    %538 = vmatpush2.bf16.msra.mxu0 0
    %539 = vmatprep.subr.bf16.mxu0 0
    %540 = vmatpush2.bf16.msra.mxu0 0
    %541 = vmatprep.subr.bf16.mxu0 0
    %542 = vmatpush2.bf16.msra.mxu0 0
    %543 = vmatprep.subr.bf16.mxu0 0
    %544 = vmatpush2.bf16.msra.mxu0 0
    %545 = vmatprep.mubr.bf16.mxu0 0
    %546 = vmatmul.mubr.bf16.gmra.mxu0 %v511
    %v547 = vpop.f32.mrf.mxu0
    %v548 = vadd.f32 0.0, %v547
    %v549 = vpop.f32.mrf.mxu0
    %v550 = vpop.f32.mrf.mxu0
    %v551 = vpop.f32.mrf.mxu0
    %552 = vdwg.mxu0
    %v553 = vadd.f32 %v506, %v548
    %v554 = vxor.u32 %v553, 2147483648
    %v555 = vmul.f32 %v554, 1.442695
    %v556 = vpow.pop %v555
    %v557 = vadd.f32 %v556, 1.0
    %v558 = vrcp.pop %v557
    %v559 = vmul.f32 1.0, %v558
    %v560 = vtanh.pop %v553
    %v561 = vmul.f32 %v559, %v495
    %563 = vrot.lane.b32.xlu0 %v560, 32
    %v564 = vpop.permute.xlu0 %563
    %v566 = vmul.f32 %v559, %v564
    %568 = vrot.lane.b32.xlu0 %v566, 32
    %v569 = vpop.permute.xlu0 %568
    %v571 = vadd.f32 %v561, %v569
    %v572 = vtanh.pop %v571
    %574 = vrot.lane.b32.xlu0 %v572, 32
    %v575 = vpop.permute.xlu0 %574
    %v577 = vmul.f32 %v559, %v575
    %v578 = vpack.c.bf16 %v503, %v503
    %580 = vrot.lane.b32.xlu0 %v578, 64
    %v581 = vpop.permute.xlu0 %580
    %v583 = vsel %vm127, %v581, 0
    %585 = vmatprep.subr.bf16.mxu0 0
    %586 = vmatpush1.bf16.msra.mxu0 0
    %587 = vmatprep.subr.bf16.mxu0 0
    %588 = vmatpush1.bf16.msra.mxu0 0
    %589 = vmatprep.subr.bf16.mxu0 0
    %590 = vmatpush1.bf16.msra.mxu0 0
    %591 = vmatprep.subr.bf16.mxu0 0
    %592 = vmatpush1.bf16.msra.mxu0 0
    %593 = vmatprep.subr.bf16.mxu0 0
    %594 = vmatpush1.bf16.msra.mxu0 0
    %595 = vmatprep.subr.bf16.mxu0 0
    %596 = vmatpush1.bf16.msra.mxu0 0
    %597 = vmatprep.subr.bf16.mxu0 0
    %598 = vmatpush1.bf16.msra.mxu0 %v362
    %599 = vmatprep.subr.bf16.mxu0 0
    %600 = vmatpush1.bf16.msra.mxu0 %v361
    %601 = vmatprep.subr.bf16.mxu0 0
    %602 = vmatpush2.bf16.msra.mxu0 0
    %603 = vmatprep.subr.bf16.mxu0 0
    %604 = vmatpush2.bf16.msra.mxu0 0
    %605 = vmatprep.subr.bf16.mxu0 0
    %606 = vmatpush2.bf16.msra.mxu0 0
    %607 = vmatprep.subr.bf16.mxu0 0
    %608 = vmatpush2.bf16.msra.mxu0 0
    %609 = vmatprep.subr.bf16.mxu0 0
    %610 = vmatpush2.bf16.msra.mxu0 0
    %611 = vmatprep.subr.bf16.mxu0 0
    %612 = vmatpush2.bf16.msra.mxu0 0
    %613 = vmatprep.subr.bf16.mxu0 0
    %614 = vmatpush2.bf16.msra.mxu0 0
    %615 = vmatprep.subr.bf16.mxu0 0
    %616 = vmatpush2.bf16.msra.mxu0 0
    %617 = vmatprep.mubr.bf16.mxu0 0
    %618 = vmatmul.mubr.bf16.gmra.mxu0 %v583
    %v619 = vpop.f32.mrf.mxu0
    %v620 = vadd.f32 0.0, %v619
    %v621 = vpop.f32.mrf.mxu0
    %v622 = vpop.f32.mrf.mxu0
    %v623 = vpop.f32.mrf.mxu0
    %624 = vdwg.mxu0
    %625 = vmatprep.subr.bf16.mxu0 0
    %626 = vmatpush1.bf16.msra.mxu0 0
    %627 = vmatprep.subr.bf16.mxu0 0
    %628 = vmatpush1.bf16.msra.mxu0 0
    %629 = vmatprep.subr.bf16.mxu0 0
    %630 = vmatpush1.bf16.msra.mxu0 0
    %631 = vmatprep.subr.bf16.mxu0 0
    %632 = vmatpush1.bf16.msra.mxu0 0
    %633 = vmatprep.subr.bf16.mxu0 0
    %634 = vmatpush1.bf16.msra.mxu0 0
    %635 = vmatprep.subr.bf16.mxu0 0
    %636 = vmatpush1.bf16.msra.mxu0 0
    %637 = vmatprep.subr.bf16.mxu0 0
    %638 = vmatpush1.bf16.msra.mxu0 %v417
    %639 = vmatprep.subr.bf16.mxu0 0
    %640 = vmatpush1.bf16.msra.mxu0 %v416
    %641 = vmatprep.subr.bf16.mxu0 0
    %642 = vmatpush2.bf16.msra.mxu0 0
    %643 = vmatprep.subr.bf16.mxu0 0
    %644 = vmatpush2.bf16.msra.mxu0 0
    %645 = vmatprep.subr.bf16.mxu0 0
    %646 = vmatpush2.bf16.msra.mxu0 0
    %647 = vmatprep.subr.bf16.mxu0 0
    %648 = vmatpush2.bf16.msra.mxu0 0
    %649 = vmatprep.subr.bf16.mxu0 0
    %650 = vmatpush2.bf16.msra.mxu0 0
    %651 = vmatprep.subr.bf16.mxu0 0
    %652 = vmatpush2.bf16.msra.mxu0 0
    %653 = vmatprep.subr.bf16.mxu0 0
    %654 = vmatpush2.bf16.msra.mxu0 0
    %655 = vmatprep.subr.bf16.mxu0 0
    %656 = vmatpush2.bf16.msra.mxu0 0
    %657 = vmatprep.mubr.bf16.mxu0 0
    %658 = vmatmul.mubr.bf16.gmra.mxu0 %v511
    %v659 = vpop.f32.mrf.mxu0
    %v660 = vadd.f32 %v620, %v659
    %v661 = vpop.f32.mrf.mxu0
    %v662 = vpop.f32.mrf.mxu0
    %v663 = vpop.f32.mrf.mxu0
    %664 = vdwg.mxu0
    %v665 = vadd.f32 %v660, %v188
    %v666 = vxor.u32 %v665, 2147483648
    %v667 = vmul.f32 %v666, 1.442695
    %v668 = vpow.pop %v667
    %v669 = vadd.f32 %v668, 1.0
    %v670 = vrcp.pop %v669
    %v671 = vmul.f32 1.0, %v670
    %v672 = vtanh.pop %v665
    %v673 = vmul.f32 %v671, %v504
    %675 = vrot.lane.b32.xlu0 %v672, 32
    %v676 = vpop.permute.xlu0 %675
    %v678 = vmul.f32 %v671, %v676
    %680 = vrot.lane.b32.xlu0 %v678, 32
    %v681 = vpop.permute.xlu0 %680
    %v683 = vadd.f32 %v673, %v681
    %v684 = vtanh.pop %v683
    %686 = vrot.lane.b32.xlu0 %v684, 32
    %v687 = vpop.permute.xlu0 %686
    %v689 = vmul.f32 %v671, %v687
    %p690 = scmp.gt.s32.totalorder %s175, 2
    %s691 = scalar_select %p690, 1, 0
    %v692 = vstv %s691
    %vm693 = vcmp.eq.s32.totalorder %v692, 1
    %v694 = vsel %vm693, %v577, %v494
    %v695 = vsel %vm693, %v571, %v495
    %v696 = vsel %vm493, %v689, %v503
    %v697 = vsel %vm493, %v683, %v504
    %v698 = vpack.c.bf16 %v694, %v694
    %v699 = vld [vmem:[#allocation3 + $0x3] sm:$0x1]
    %701 = vrot.lane.b32.xlu0 %v698, 64
    %v702 = vpop.permute.xlu0 %701
    %v704 = vsel %vm127, %v702, 0
    %706 = vmatprep.subr.bf16.mxu0 0
    %707 = vmatpush1.bf16.msra.mxu0 0
    %708 = vmatprep.subr.bf16.mxu0 0
    %709 = vmatpush1.bf16.msra.mxu0 0
    %710 = vmatprep.subr.bf16.mxu0 0
    %711 = vmatpush1.bf16.msra.mxu0 0
    %712 = vmatprep.subr.bf16.mxu0 0
    %713 = vmatpush1.bf16.msra.mxu0 0
    %714 = vmatprep.subr.bf16.mxu0 0
    %715 = vmatpush1.bf16.msra.mxu0 0
    %716 = vmatprep.subr.bf16.mxu0 0
    %717 = vmatpush1.bf16.msra.mxu0 0
    %718 = vmatprep.subr.bf16.mxu0 0
    %719 = vmatpush1.bf16.msra.mxu0 %v204
    %720 = vmatprep.subr.bf16.mxu0 0
    %721 = vmatpush1.bf16.msra.mxu0 %v203
    %722 = vmatprep.subr.bf16.mxu0 0
    %723 = vmatpush2.bf16.msra.mxu0 0
    %724 = vmatprep.subr.bf16.mxu0 0
    %725 = vmatpush2.bf16.msra.mxu0 0
    %726 = vmatprep.subr.bf16.mxu0 0
    %727 = vmatpush2.bf16.msra.mxu0 0
    %728 = vmatprep.subr.bf16.mxu0 0
    %729 = vmatpush2.bf16.msra.mxu0 0
    %730 = vmatprep.subr.bf16.mxu0 0
    %731 = vmatpush2.bf16.msra.mxu0 0
    %732 = vmatprep.subr.bf16.mxu0 0
    %733 = vmatpush2.bf16.msra.mxu0 0
    %734 = vmatprep.subr.bf16.mxu0 0
    %735 = vmatpush2.bf16.msra.mxu0 0
    %736 = vmatprep.subr.bf16.mxu0 0
    %737 = vmatpush2.bf16.msra.mxu0 0
    %738 = vmatprep.mubr.bf16.mxu0 0
    %739 = vmatmul.mubr.bf16.gmra.mxu0 %v704
    %v740 = vpop.f32.mrf.mxu0
    %v741 = vadd.f32 0.0, %v740
    %v742 = vpop.f32.mrf.mxu0
    %v743 = vpop.f32.mrf.mxu0
    %v744 = vpop.f32.mrf.mxu0
    %745 = vdwg.mxu0
    %v746 = vadd.f32 %v699, %v741
    %v747 = vxor.u32 %v746, 2147483648
    %v748 = vmul.f32 %v747, 1.442695
    %v749 = vpow.pop %v748
    %v750 = vadd.f32 %v749, 1.0
    %v751 = vrcp.pop %v750
    %v752 = vmul.f32 1.0, %v751
    %v753 = vtanh.pop %v746
    %v754 = vmul.f32 %v752, %v695
    %756 = vrot.lane.b32.xlu0 %v753, 32
    %v757 = vpop.permute.xlu0 %756
    %v759 = vmul.f32 %v752, %v757
    %761 = vrot.lane.b32.xlu0 %v759, 32
    %v762 = vpop.permute.xlu0 %761
    %v764 = vadd.f32 %v754, %v762
    %v765 = vtanh.pop %v764
    %767 = vrot.lane.b32.xlu0 %v765, 32
    %v768 = vpop.permute.xlu0 %767
    %v770 = vmul.f32 %v752, %v768
    %v771 = vpack.c.bf16 %v696, %v696
    %773 = vrot.lane.b32.xlu0 %v771, 64
    %v774 = vpop.permute.xlu0 %773
    %v776 = vsel %vm127, %v774, 0
    %778 = vmatprep.subr.bf16.mxu0 0
    %779 = vmatpush1.bf16.msra.mxu0 0
    %780 = vmatprep.subr.bf16.mxu0 0
    %781 = vmatpush1.bf16.msra.mxu0 0
    %782 = vmatprep.subr.bf16.mxu0 0
    %783 = vmatpush1.bf16.msra.mxu0 0
    %784 = vmatprep.subr.bf16.mxu0 0
    %785 = vmatpush1.bf16.msra.mxu0 0
    %786 = vmatprep.subr.bf16.mxu0 0
    %787 = vmatpush1.bf16.msra.mxu0 0
    %788 = vmatprep.subr.bf16.mxu0 0
    %789 = vmatpush1.bf16.msra.mxu0 0
    %790 = vmatprep.subr.bf16.mxu0 0
    %791 = vmatpush1.bf16.msra.mxu0 %v362
    %792 = vmatprep.subr.bf16.mxu0 0
    %793 = vmatpush1.bf16.msra.mxu0 %v361
    %794 = vmatprep.subr.bf16.mxu0 0
    %795 = vmatpush2.bf16.msra.mxu0 0
    %796 = vmatprep.subr.bf16.mxu0 0
    %797 = vmatpush2.bf16.msra.mxu0 0
    %798 = vmatprep.subr.bf16.mxu0 0
    %799 = vmatpush2.bf16.msra.mxu0 0
    %800 = vmatprep.subr.bf16.mxu0 0
    %801 = vmatpush2.bf16.msra.mxu0 0
    %802 = vmatprep.subr.bf16.mxu0 0
    %803 = vmatpush2.bf16.msra.mxu0 0
    %804 = vmatprep.subr.bf16.mxu0 0
    %805 = vmatpush2.bf16.msra.mxu0 0
    %806 = vmatprep.subr.bf16.mxu0 0
    %807 = vmatpush2.bf16.msra.mxu0 0
    %808 = vmatprep.subr.bf16.mxu0 0
    %809 = vmatpush2.bf16.msra.mxu0 0
    %810 = vmatprep.mubr.bf16.mxu0 0
    %811 = vmatmul.mubr.bf16.gmra.mxu0 %v776
    %v812 = vpop.f32.mrf.mxu0
    %v813 = vadd.f32 0.0, %v812
    %v814 = vpop.f32.mrf.mxu0
    %v815 = vpop.f32.mrf.mxu0
    %v816 = vpop.f32.mrf.mxu0
    %817 = vdwg.mxu0
    %818 = vmatprep.subr.bf16.mxu0 0
    %819 = vmatpush1.bf16.msra.mxu0 0
    %820 = vmatprep.subr.bf16.mxu0 0
    %821 = vmatpush1.bf16.msra.mxu0 0
    %822 = vmatprep.subr.bf16.mxu0 0
    %823 = vmatpush1.bf16.msra.mxu0 0
    %824 = vmatprep.subr.bf16.mxu0 0
    %825 = vmatpush1.bf16.msra.mxu0 0
    %826 = vmatprep.subr.bf16.mxu0 0
    %827 = vmatpush1.bf16.msra.mxu0 0
    %828 = vmatprep.subr.bf16.mxu0 0
    %829 = vmatpush1.bf16.msra.mxu0 0
    %830 = vmatprep.subr.bf16.mxu0 0
    %831 = vmatpush1.bf16.msra.mxu0 %v417
    %832 = vmatprep.subr.bf16.mxu0 0
    %833 = vmatpush1.bf16.msra.mxu0 %v416
    %834 = vmatprep.subr.bf16.mxu0 0
    %835 = vmatpush2.bf16.msra.mxu0 0
    %836 = vmatprep.subr.bf16.mxu0 0
    %837 = vmatpush2.bf16.msra.mxu0 0
    %838 = vmatprep.subr.bf16.mxu0 0
    %839 = vmatpush2.bf16.msra.mxu0 0
    %840 = vmatprep.subr.bf16.mxu0 0
    %841 = vmatpush2.bf16.msra.mxu0 0
    %842 = vmatprep.subr.bf16.mxu0 0
    %843 = vmatpush2.bf16.msra.mxu0 0
    %844 = vmatprep.subr.bf16.mxu0 0
    %845 = vmatpush2.bf16.msra.mxu0 0
    %846 = vmatprep.subr.bf16.mxu0 0
    %847 = vmatpush2.bf16.msra.mxu0 0
    %848 = vmatprep.subr.bf16.mxu0 0
    %849 = vmatpush2.bf16.msra.mxu0 0
    %850 = vmatprep.mubr.bf16.mxu0 0
    %851 = vmatmul.mubr.bf16.gmra.mxu0 %v704
    %v852 = vpop.f32.mrf.mxu0
    %v853 = vadd.f32 %v813, %v852
    %v854 = vpop.f32.mrf.mxu0
    %v855 = vpop.f32.mrf.mxu0
    %v856 = vpop.f32.mrf.mxu0
    %857 = vdwg.mxu0
    %v858 = vadd.f32 %v853, %v188
    %v859 = vxor.u32 %v858, 2147483648
    %v860 = vmul.f32 %v859, 1.442695
    %v861 = vpow.pop %v860
    %v862 = vadd.f32 %v861, 1.0
    %v863 = vrcp.pop %v862
    %v864 = vmul.f32 1.0, %v863
    %v865 = vtanh.pop %v858
    %v866 = vmul.f32 %v864, %v697
    %868 = vrot.lane.b32.xlu0 %v865, 32
    %v869 = vpop.permute.xlu0 %868
    %v871 = vmul.f32 %v864, %v869
    %873 = vrot.lane.b32.xlu0 %v871, 32
    %v874 = vpop.permute.xlu0 %873
    %v876 = vadd.f32 %v866, %v874
    %v877 = vtanh.pop %v876
    %879 = vrot.lane.b32.xlu0 %v877, 32
    %v880 = vpop.permute.xlu0 %879
    %v882 = vmul.f32 %v864, %v880
    %p883 = scmp.gt.s32.totalorder %s175, 3
    %s884 = scalar_select %p883, 1, 0
    %v885 = vstv %s884
    %vm886 = vcmp.eq.s32.totalorder %v885, 1
    %v887 = vsel %vm886, %v770, %v694
    %v888 = vsel %vm886, %v764, %v695
    %v889 = vsel %vm693, %v882, %v696
    %v890 = vsel %vm693, %v876, %v697
    %v891 = vpack.c.bf16 %v887, %v887
    %v892 = vld [vmem:[#allocation3 + $0x4] sm:$0x1]
    %894 = vrot.lane.b32.xlu0 %v891, 64
    %v895 = vpop.permute.xlu0 %894
    %v897 = vsel %vm127, %v895, 0
    %899 = vmatprep.subr.bf16.mxu0 0
    %900 = vmatpush1.bf16.msra.mxu0 0
    %901 = vmatprep.subr.bf16.mxu0 0
    %902 = vmatpush1.bf16.msra.mxu0 0
    %903 = vmatprep.subr.bf16.mxu0 0
    %904 = vmatpush1.bf16.msra.mxu0 0
    %905 = vmatprep.subr.bf16.mxu0 0
    %906 = vmatpush1.bf16.msra.mxu0 0
    %907 = vmatprep.subr.bf16.mxu0 0
    %908 = vmatpush1.bf16.msra.mxu0 0
    %909 = vmatprep.subr.bf16.mxu0 0
    %910 = vmatpush1.bf16.msra.mxu0 0
    %911 = vmatprep.subr.bf16.mxu0 0
    %912 = vmatpush1.bf16.msra.mxu0 %v204
    %913 = vmatprep.subr.bf16.mxu0 0
    %914 = vmatpush1.bf16.msra.mxu0 %v203
    %915 = vmatprep.subr.bf16.mxu0 0
    %916 = vmatpush2.bf16.msra.mxu0 0
    %917 = vmatprep.subr.bf16.mxu0 0
    %918 = vmatpush2.bf16.msra.mxu0 0
    %919 = vmatprep.subr.bf16.mxu0 0
    %920 = vmatpush2.bf16.msra.mxu0 0
    %921 = vmatprep.subr.bf16.mxu0 0
    %922 = vmatpush2.bf16.msra.mxu0 0
    %923 = vmatprep.subr.bf16.mxu0 0
    %924 = vmatpush2.bf16.msra.mxu0 0
    %925 = vmatprep.subr.bf16.mxu0 0
    %926 = vmatpush2.bf16.msra.mxu0 0
    %927 = vmatprep.subr.bf16.mxu0 0
    %928 = vmatpush2.bf16.msra.mxu0 0
    %929 = vmatprep.subr.bf16.mxu0 0
    %930 = vmatpush2.bf16.msra.mxu0 0
    %931 = vmatprep.mubr.bf16.mxu0 0
    %932 = vmatmul.mubr.bf16.gmra.mxu0 %v897
    %v933 = vpop.f32.mrf.mxu0
    %v934 = vadd.f32 0.0, %v933
    %v935 = vpop.f32.mrf.mxu0
    %v936 = vpop.f32.mrf.mxu0
    %v937 = vpop.f32.mrf.mxu0
    %938 = vdwg.mxu0
    %v939 = vadd.f32 %v892, %v934
    %v940 = vxor.u32 %v939, 2147483648
    %v941 = vmul.f32 %v940, 1.442695
    %v942 = vpow.pop %v941
    %v943 = vadd.f32 %v942, 1.0
    %v944 = vrcp.pop %v943
    %v945 = vmul.f32 1.0, %v944
    %v946 = vtanh.pop %v939
    %v947 = vmul.f32 %v945, %v888
    %949 = vrot.lane.b32.xlu0 %v946, 32
    %v950 = vpop.permute.xlu0 %949
    %v952 = vmul.f32 %v945, %v950
    %954 = vrot.lane.b32.xlu0 %v952, 32
    %v955 = vpop.permute.xlu0 %954
    %v957 = vadd.f32 %v947, %v955
    %v958 = vtanh.pop %v957
    %960 = vrot.lane.b32.xlu0 %v958, 32
    %v961 = vpop.permute.xlu0 %960
    %v963 = vmul.f32 %v945, %v961
    %v964 = vpack.c.bf16 %v889, %v889
    %966 = vrot.lane.b32.xlu0 %v964, 64
    %v967 = vpop.permute.xlu0 %966
    %v969 = vsel %vm127, %v967, 0
    %971 = vmatprep.subr.bf16.mxu0 0
    %972 = vmatpush1.bf16.msra.mxu0 0
    %973 = vmatprep.subr.bf16.mxu0 0
    %974 = vmatpush1.bf16.msra.mxu0 0
    %975 = vmatprep.subr.bf16.mxu0 0
    %976 = vmatpush1.bf16.msra.mxu0 0
    %977 = vmatprep.subr.bf16.mxu0 0
    %978 = vmatpush1.bf16.msra.mxu0 0
    %979 = vmatprep.subr.bf16.mxu0 0
    %980 = vmatpush1.bf16.msra.mxu0 0
    %981 = vmatprep.subr.bf16.mxu0 0
    %982 = vmatpush1.bf16.msra.mxu0 0
    %983 = vmatprep.subr.bf16.mxu0 0
    %984 = vmatpush1.bf16.msra.mxu0 %v362
    %985 = vmatprep.subr.bf16.mxu0 0
    %986 = vmatpush1.bf16.msra.mxu0 %v361
    %987 = vmatprep.subr.bf16.mxu0 0
    %988 = vmatpush2.bf16.msra.mxu0 0
    %989 = vmatprep.subr.bf16.mxu0 0
    %990 = vmatpush2.bf16.msra.mxu0 0
    %991 = vmatprep.subr.bf16.mxu0 0
    %992 = vmatpush2.bf16.msra.mxu0 0
    %993 = vmatprep.subr.bf16.mxu0 0
    %994 = vmatpush2.bf16.msra.mxu0 0
    %995 = vmatprep.subr.bf16.mxu0 0
    %996 = vmatpush2.bf16.msra.mxu0 0
    %997 = vmatprep.subr.bf16.mxu0 0
    %998 = vmatpush2.bf16.msra.mxu0 0
    %999 = vmatprep.subr.bf16.mxu0 0
    %1000 = vmatpush2.bf16.msra.mxu0 0
    %1001 = vmatprep.subr.bf16.mxu0 0
    %1002 = vmatpush2.bf16.msra.mxu0 0
    %1003 = vmatprep.mubr.bf16.mxu0 0
    %1004 = vmatmul.mubr.bf16.gmra.mxu0 %v969
    %v1005 = vpop.f32.mrf.mxu0
    %v1006 = vadd.f32 0.0, %v1005
    %v1007 = vpop.f32.mrf.mxu0
    %v1008 = vpop.f32.mrf.mxu0
    %v1009 = vpop.f32.mrf.mxu0
    %1010 = vdwg.mxu0
    %1011 = vmatprep.subr.bf16.mxu0 0
    %1012 = vmatpush1.bf16.msra.mxu0 0
    %1013 = vmatprep.subr.bf16.mxu0 0
    %1014 = vmatpush1.bf16.msra.mxu0 0
    %1015 = vmatprep.subr.bf16.mxu0 0
    %1016 = vmatpush1.bf16.msra.mxu0 0
    %1017 = vmatprep.subr.bf16.mxu0 0
    %1018 = vmatpush1.bf16.msra.mxu0 0
    %1019 = vmatprep.subr.bf16.mxu0 0
    %1020 = vmatpush1.bf16.msra.mxu0 0
    %1021 = vmatprep.subr.bf16.mxu0 0
    %1022 = vmatpush1.bf16.msra.mxu0 0
    %1023 = vmatprep.subr.bf16.mxu0 0
    %1024 = vmatpush1.bf16.msra.mxu0 %v417
    %1025 = vmatprep.subr.bf16.mxu0 0
    %1026 = vmatpush1.bf16.msra.mxu0 %v416
    %1027 = vmatprep.subr.bf16.mxu0 0
    %1028 = vmatpush2.bf16.msra.mxu0 0
    %1029 = vmatprep.subr.bf16.mxu0 0
    %1030 = vmatpush2.bf16.msra.mxu0 0
    %1031 = vmatprep.subr.bf16.mxu0 0
    %1032 = vmatpush2.bf16.msra.mxu0 0
    %1033 = vmatprep.subr.bf16.mxu0 0
    %1034 = vmatpush2.bf16.msra.mxu0 0
    %1035 = vmatprep.subr.bf16.mxu0 0
    %1036 = vmatpush2.bf16.msra.mxu0 0
    %1037 = vmatprep.subr.bf16.mxu0 0
    %1038 = vmatpush2.bf16.msra.mxu0 0
    %1039 = vmatprep.subr.bf16.mxu0 0
    %1040 = vmatpush2.bf16.msra.mxu0 0
    %1041 = vmatprep.subr.bf16.mxu0 0
    %1042 = vmatpush2.bf16.msra.mxu0 0
    %1043 = vmatprep.mubr.bf16.mxu0 0
    %1044 = vmatmul.mubr.bf16.gmra.mxu0 %v897
    %v1045 = vpop.f32.mrf.mxu0
    %v1046 = vadd.f32 %v1006, %v1045
    %v1047 = vpop.f32.mrf.mxu0
    %v1048 = vpop.f32.mrf.mxu0
    %v1049 = vpop.f32.mrf.mxu0
    %1050 = vdwg.mxu0
    %v1051 = vadd.f32 %v1046, %v188
    %v1052 = vxor.u32 %v1051, 2147483648
    %v1053 = vmul.f32 %v1052, 1.442695
    %v1054 = vpow.pop %v1053
    %v1055 = vadd.f32 %v1054, 1.0
    %v1056 = vrcp.pop %v1055
    %v1057 = vmul.f32 1.0, %v1056
    %v1058 = vtanh.pop %v1051
    %v1059 = vmul.f32 %v1057, %v890
    %1061 = vrot.lane.b32.xlu0 %v1058, 32
    %v1062 = vpop.permute.xlu0 %1061
    %v1064 = vmul.f32 %v1057, %v1062
    %1066 = vrot.lane.b32.xlu0 %v1064, 32
    %v1067 = vpop.permute.xlu0 %1066
    %v1069 = vadd.f32 %v1059, %v1067
    %v1070 = vtanh.pop %v1069
    %1072 = vrot.lane.b32.xlu0 %v1070, 32
    %v1073 = vpop.permute.xlu0 %1072
    %v1075 = vmul.f32 %v1057, %v1073
    %p1076 = scmp.gt.s32.totalorder %s175, 4
    %s1077 = scalar_select %p1076, 1, 0
    %v1078 = vstv %s1077
    %vm1079 = vcmp.eq.s32.totalorder %v1078, 1
    %v1080 = vsel %vm1079, %v963, %v887
    %v1081 = vsel %vm1079, %v957, %v888
    %v1082 = vsel %vm886, %v1075, %v889
    %v1083 = vsel %vm886, %v1069, %v890
    %v1084 = vpack.c.bf16 %v1080, %v1080
    %v1085 = vld [vmem:[#allocation3 + $0x5] sm:$0x1]
    %1087 = vrot.lane.b32.xlu0 %v1084, 64
    %v1088 = vpop.permute.xlu0 %1087
    %v1090 = vsel %vm127, %v1088, 0
    %1092 = vmatprep.subr.bf16.mxu0 0
    %1093 = vmatpush1.bf16.msra.mxu0 0
    %1094 = vmatprep.subr.bf16.mxu0 0
    %1095 = vmatpush1.bf16.msra.mxu0 0
    %1096 = vmatprep.subr.bf16.mxu0 0
    %1097 = vmatpush1.bf16.msra.mxu0 0
    %1098 = vmatprep.subr.bf16.mxu0 0
    %1099 = vmatpush1.bf16.msra.mxu0 0
    %1100 = vmatprep.subr.bf16.mxu0 0
    %1101 = vmatpush1.bf16.msra.mxu0 0
    %1102 = vmatprep.subr.bf16.mxu0 0
    %1103 = vmatpush1.bf16.msra.mxu0 0
    %1104 = vmatprep.subr.bf16.mxu0 0
    %1105 = vmatpush1.bf16.msra.mxu0 %v204
    %1106 = vmatprep.subr.bf16.mxu0 0
    %1107 = vmatpush1.bf16.msra.mxu0 %v203
    %1108 = vmatprep.subr.bf16.mxu0 0
    %1109 = vmatpush2.bf16.msra.mxu0 0
    %1110 = vmatprep.subr.bf16.mxu0 0
    %1111 = vmatpush2.bf16.msra.mxu0 0
    %1112 = vmatprep.subr.bf16.mxu0 0
    %1113 = vmatpush2.bf16.msra.mxu0 0
    %1114 = vmatprep.subr.bf16.mxu0 0
    %1115 = vmatpush2.bf16.msra.mxu0 0
    %1116 = vmatprep.subr.bf16.mxu0 0
    %1117 = vmatpush2.bf16.msra.mxu0 0
    %1118 = vmatprep.subr.bf16.mxu0 0
    %1119 = vmatpush2.bf16.msra.mxu0 0
    %1120 = vmatprep.subr.bf16.mxu0 0
    %1121 = vmatpush2.bf16.msra.mxu0 0
    %1122 = vmatprep.subr.bf16.mxu0 0
    %1123 = vmatpush2.bf16.msra.mxu0 0
    %1124 = vmatprep.mubr.bf16.mxu0 0
    %1125 = vmatmul.mubr.bf16.gmra.mxu0 %v1090
    %v1126 = vpop.f32.mrf.mxu0
    %v1127 = vadd.f32 0.0, %v1126
    %v1128 = vpop.f32.mrf.mxu0
    %v1129 = vpop.f32.mrf.mxu0
    %v1130 = vpop.f32.mrf.mxu0
    %1131 = vdwg.mxu0
    %v1132 = vadd.f32 %v1085, %v1127
    %v1133 = vxor.u32 %v1132, 2147483648
    %v1134 = vmul.f32 %v1133, 1.442695
    %v1135 = vpow.pop %v1134
    %v1136 = vadd.f32 %v1135, 1.0
    %v1137 = vrcp.pop %v1136
    %v1138 = vmul.f32 1.0, %v1137
    %v1139 = vtanh.pop %v1132
    %v1140 = vmul.f32 %v1138, %v1081
    %1142 = vrot.lane.b32.xlu0 %v1139, 32
    %v1143 = vpop.permute.xlu0 %1142
    %v1145 = vmul.f32 %v1138, %v1143
    %1147 = vrot.lane.b32.xlu0 %v1145, 32
    %v1148 = vpop.permute.xlu0 %1147
    %v1150 = vadd.f32 %v1140, %v1148
    %v1151 = vtanh.pop %v1150
    %1153 = vrot.lane.b32.xlu0 %v1151, 32
    %v1154 = vpop.permute.xlu0 %1153
    %v1156 = vmul.f32 %v1138, %v1154
    %v1157 = vpack.c.bf16 %v1082, %v1082
    %1159 = vrot.lane.b32.xlu0 %v1157, 64
    %v1160 = vpop.permute.xlu0 %1159
    %v1162 = vsel %vm127, %v1160, 0
    %1164 = vmatprep.subr.bf16.mxu0 0
    %1165 = vmatpush1.bf16.msra.mxu0 0
    %1166 = vmatprep.subr.bf16.mxu0 0
    %1167 = vmatpush1.bf16.msra.mxu0 0
    %1168 = vmatprep.subr.bf16.mxu0 0
    %1169 = vmatpush1.bf16.msra.mxu0 0
    %1170 = vmatprep.subr.bf16.mxu0 0
    %1171 = vmatpush1.bf16.msra.mxu0 0
    %1172 = vmatprep.subr.bf16.mxu0 0
    %1173 = vmatpush1.bf16.msra.mxu0 0
    %1174 = vmatprep.subr.bf16.mxu0 0
    %1175 = vmatpush1.bf16.msra.mxu0 0
    %1176 = vmatprep.subr.bf16.mxu0 0
    %1177 = vmatpush1.bf16.msra.mxu0 %v362
    %1178 = vmatprep.subr.bf16.mxu0 0
    %1179 = vmatpush1.bf16.msra.mxu0 %v361
    %1180 = vmatprep.subr.bf16.mxu0 0
    %1181 = vmatpush2.bf16.msra.mxu0 0
    %1182 = vmatprep.subr.bf16.mxu0 0
    %1183 = vmatpush2.bf16.msra.mxu0 0
    %1184 = vmatprep.subr.bf16.mxu0 0
    %1185 = vmatpush2.bf16.msra.mxu0 0
    %1186 = vmatprep.subr.bf16.mxu0 0
    %1187 = vmatpush2.bf16.msra.mxu0 0
    %1188 = vmatprep.subr.bf16.mxu0 0
    %1189 = vmatpush2.bf16.msra.mxu0 0
    %1190 = vmatprep.subr.bf16.mxu0 0
    %1191 = vmatpush2.bf16.msra.mxu0 0
    %1192 = vmatprep.subr.bf16.mxu0 0
    %1193 = vmatpush2.bf16.msra.mxu0 0
    %1194 = vmatprep.subr.bf16.mxu0 0
    %1195 = vmatpush2.bf16.msra.mxu0 0
    %1196 = vmatprep.mubr.bf16.mxu0 0
    %1197 = vmatmul.mubr.bf16.gmra.mxu0 %v1162
    %v1198 = vpop.f32.mrf.mxu0
    %v1199 = vadd.f32 0.0, %v1198
    %v1200 = vpop.f32.mrf.mxu0
    %v1201 = vpop.f32.mrf.mxu0
    %v1202 = vpop.f32.mrf.mxu0
    %1203 = vdwg.mxu0
    %1204 = vmatprep.subr.bf16.mxu0 0
    %1205 = vmatpush1.bf16.msra.mxu0 0
    %1206 = vmatprep.subr.bf16.mxu0 0
    %1207 = vmatpush1.bf16.msra.mxu0 0
    %1208 = vmatprep.subr.bf16.mxu0 0
    %1209 = vmatpush1.bf16.msra.mxu0 0
    %1210 = vmatprep.subr.bf16.mxu0 0
    %1211 = vmatpush1.bf16.msra.mxu0 0
    %1212 = vmatprep.subr.bf16.mxu0 0
    %1213 = vmatpush1.bf16.msra.mxu0 0
    %1214 = vmatprep.subr.bf16.mxu0 0
    %1215 = vmatpush1.bf16.msra.mxu0 0
    %1216 = vmatprep.subr.bf16.mxu0 0
    %1217 = vmatpush1.bf16.msra.mxu0 %v417
    %1218 = vmatprep.subr.bf16.mxu0 0
    %1219 = vmatpush1.bf16.msra.mxu0 %v416
    %1220 = vmatprep.subr.bf16.mxu0 0
    %1221 = vmatpush2.bf16.msra.mxu0 0
    %1222 = vmatprep.subr.bf16.mxu0 0
    %1223 = vmatpush2.bf16.msra.mxu0 0
    %1224 = vmatprep.subr.bf16.mxu0 0
    %1225 = vmatpush2.bf16.msra.mxu0 0
    %1226 = vmatprep.subr.bf16.mxu0 0
    %1227 = vmatpush2.bf16.msra.mxu0 0
    %1228 = vmatprep.subr.bf16.mxu0 0
    %1229 = vmatpush2.bf16.msra.mxu0 0
    %1230 = vmatprep.subr.bf16.mxu0 0
    %1231 = vmatpush2.bf16.msra.mxu0 0
    %1232 = vmatprep.subr.bf16.mxu0 0
    %1233 = vmatpush2.bf16.msra.mxu0 0
    %1234 = vmatprep.subr.bf16.mxu0 0
    %1235 = vmatpush2.bf16.msra.mxu0 0
    %1236 = vmatprep.mubr.bf16.mxu0 0
    %1237 = vmatmul.mubr.bf16.gmra.mxu0 %v1090
    %v1238 = vpop.f32.mrf.mxu0
    %v1239 = vadd.f32 %v1199, %v1238
    %v1240 = vpop.f32.mrf.mxu0
    %v1241 = vpop.f32.mrf.mxu0
    %v1242 = vpop.f32.mrf.mxu0
    %1243 = vdwg.mxu0
    %v1244 = vadd.f32 %v1239, %v188
    %v1245 = vxor.u32 %v1244, 2147483648
    %v1246 = vmul.f32 %v1245, 1.442695
    %v1247 = vpow.pop %v1246
    %v1248 = vadd.f32 %v1247, 1.0
    %v1249 = vrcp.pop %v1248
    %v1250 = vmul.f32 1.0, %v1249
    %v1251 = vtanh.pop %v1244
    %v1252 = vmul.f32 %v1250, %v1083
    %1254 = vrot.lane.b32.xlu0 %v1251, 32
    %v1255 = vpop.permute.xlu0 %1254
    %v1257 = vmul.f32 %v1250, %v1255
    %1259 = vrot.lane.b32.xlu0 %v1257, 32
    %v1260 = vpop.permute.xlu0 %1259
    %v1262 = vadd.f32 %v1252, %v1260
    %v1263 = vtanh.pop %v1262
    %1265 = vrot.lane.b32.xlu0 %v1263, 32
    %v1266 = vpop.permute.xlu0 %1265
    %v1268 = vmul.f32 %v1250, %v1266
    %p1269 = scmp.gt.s32.totalorder %s175, 5
    %s1270 = scalar_select %p1269, 1, 0
    %v1271 = vstv %s1270
    %vm1272 = vcmp.eq.s32.totalorder %v1271, 1
    %v1273 = vsel %vm1272, %v1156, %v1080
    %v1274 = vsel %vm1272, %v1150, %v1081
    %v1275 = vsel %vm1079, %v1268, %v1082
    %v1276 = vsel %vm1079, %v1262, %v1083
    %v1277 = vpack.c.bf16 %v1273, %v1273
    %v1278 = vld [vmem:[#allocation3 + $0x6] sm:$0x1]
    %1280 = vrot.lane.b32.xlu0 %v1277, 64
    %v1281 = vpop.permute.xlu0 %1280
    %v1283 = vsel %vm127, %v1281, 0
    %1285 = vmatprep.subr.bf16.mxu0 0
    %1286 = vmatpush1.bf16.msra.mxu0 0
    %1287 = vmatprep.subr.bf16.mxu0 0
    %1288 = vmatpush1.bf16.msra.mxu0 0
    %1289 = vmatprep.subr.bf16.mxu0 0
    %1290 = vmatpush1.bf16.msra.mxu0 0
    %1291 = vmatprep.subr.bf16.mxu0 0
    %1292 = vmatpush1.bf16.msra.mxu0 0
    %1293 = vmatprep.subr.bf16.mxu0 0
    %1294 = vmatpush1.bf16.msra.mxu0 0
    %1295 = vmatprep.subr.bf16.mxu0 0
    %1296 = vmatpush1.bf16.msra.mxu0 0
    %1297 = vmatprep.subr.bf16.mxu0 0
    %1298 = vmatpush1.bf16.msra.mxu0 %v204
    %1299 = vmatprep.subr.bf16.mxu0 0
    %1300 = vmatpush1.bf16.msra.mxu0 %v203
    %1301 = vmatprep.subr.bf16.mxu0 0
    %1302 = vmatpush2.bf16.msra.mxu0 0
    %1303 = vmatprep.subr.bf16.mxu0 0
    %1304 = vmatpush2.bf16.msra.mxu0 0
    %1305 = vmatprep.subr.bf16.mxu0 0
    %1306 = vmatpush2.bf16.msra.mxu0 0
    %1307 = vmatprep.subr.bf16.mxu0 0
    %1308 = vmatpush2.bf16.msra.mxu0 0
    %1309 = vmatprep.subr.bf16.mxu0 0
    %1310 = vmatpush2.bf16.msra.mxu0 0
    %1311 = vmatprep.subr.bf16.mxu0 0
    %1312 = vmatpush2.bf16.msra.mxu0 0
    %1313 = vmatprep.subr.bf16.mxu0 0
    %1314 = vmatpush2.bf16.msra.mxu0 0
    %1315 = vmatprep.subr.bf16.mxu0 0
    %1316 = vmatpush2.bf16.msra.mxu0 0
    %1317 = vmatprep.mubr.bf16.mxu0 0
    %1318 = vmatmul.mubr.bf16.gmra.mxu0 %v1283
    %v1319 = vpop.f32.mrf.mxu0
    %v1320 = vadd.f32 0.0, %v1319
    %v1321 = vpop.f32.mrf.mxu0
    %v1322 = vpop.f32.mrf.mxu0
    %v1323 = vpop.f32.mrf.mxu0
    %1324 = vdwg.mxu0
    %v1325 = vadd.f32 %v1278, %v1320
    %v1326 = vxor.u32 %v1325, 2147483648
    %v1327 = vmul.f32 %v1326, 1.442695
    %v1328 = vpow.pop %v1327
    %v1329 = vadd.f32 %v1328, 1.0
    %v1330 = vrcp.pop %v1329
    %v1331 = vmul.f32 1.0, %v1330
    %v1332 = vtanh.pop %v1325
    %v1333 = vmul.f32 %v1331, %v1274
    %1335 = vrot.lane.b32.xlu0 %v1332, 32
    %v1336 = vpop.permute.xlu0 %1335
    %v1338 = vmul.f32 %v1331, %v1336
    %1340 = vrot.lane.b32.xlu0 %v1338, 32
    %v1341 = vpop.permute.xlu0 %1340
    %v1343 = vadd.f32 %v1333, %v1341
    %v1344 = vtanh.pop %v1343
    %1346 = vrot.lane.b32.xlu0 %v1344, 32
    %v1347 = vpop.permute.xlu0 %1346
    %v1349 = vmul.f32 %v1331, %v1347
    %v1350 = vpack.c.bf16 %v1275, %v1275
    %1352 = vrot.lane.b32.xlu0 %v1350, 64
    %v1353 = vpop.permute.xlu0 %1352
    %v1355 = vsel %vm127, %v1353, 0
    %1357 = vmatprep.subr.bf16.mxu0 0
    %1358 = vmatpush1.bf16.msra.mxu0 0
    %1359 = vmatprep.subr.bf16.mxu0 0
    %1360 = vmatpush1.bf16.msra.mxu0 0
    %1361 = vmatprep.subr.bf16.mxu0 0
    %1362 = vmatpush1.bf16.msra.mxu0 0
    %1363 = vmatprep.subr.bf16.mxu0 0
    %1364 = vmatpush1.bf16.msra.mxu0 0
    %1365 = vmatprep.subr.bf16.mxu0 0
    %1366 = vmatpush1.bf16.msra.mxu0 0
    %1367 = vmatprep.subr.bf16.mxu0 0
    %1368 = vmatpush1.bf16.msra.mxu0 0
    %1369 = vmatprep.subr.bf16.mxu0 0
    %1370 = vmatpush1.bf16.msra.mxu0 %v362
    %1371 = vmatprep.subr.bf16.mxu0 0
    %1372 = vmatpush1.bf16.msra.mxu0 %v361
    %1373 = vmatprep.subr.bf16.mxu0 0
    %1374 = vmatpush2.bf16.msra.mxu0 0
    %1375 = vmatprep.subr.bf16.mxu0 0
    %1376 = vmatpush2.bf16.msra.mxu0 0
    %1377 = vmatprep.subr.bf16.mxu0 0
    %1378 = vmatpush2.bf16.msra.mxu0 0
    %1379 = vmatprep.subr.bf16.mxu0 0
    %1380 = vmatpush2.bf16.msra.mxu0 0
    %1381 = vmatprep.subr.bf16.mxu0 0
    %1382 = vmatpush2.bf16.msra.mxu0 0
    %1383 = vmatprep.subr.bf16.mxu0 0
    %1384 = vmatpush2.bf16.msra.mxu0 0
    %1385 = vmatprep.subr.bf16.mxu0 0
    %1386 = vmatpush2.bf16.msra.mxu0 0
    %1387 = vmatprep.subr.bf16.mxu0 0
    %1388 = vmatpush2.bf16.msra.mxu0 0
    %1389 = vmatprep.mubr.bf16.mxu0 0
    %1390 = vmatmul.mubr.bf16.gmra.mxu0 %v1355
    %v1391 = vpop.f32.mrf.mxu0
    %v1392 = vadd.f32 0.0, %v1391
    %v1393 = vpop.f32.mrf.mxu0
    %v1394 = vpop.f32.mrf.mxu0
    %v1395 = vpop.f32.mrf.mxu0
    %1396 = vdwg.mxu0
    %1397 = vmatprep.subr.bf16.mxu0 0
    %1398 = vmatpush1.bf16.msra.mxu0 0
    %1399 = vmatprep.subr.bf16.mxu0 0
    %1400 = vmatpush1.bf16.msra.mxu0 0
    %1401 = vmatprep.subr.bf16.mxu0 0
    %1402 = vmatpush1.bf16.msra.mxu0 0
    %1403 = vmatprep.subr.bf16.mxu0 0
    %1404 = vmatpush1.bf16.msra.mxu0 0
    %1405 = vmatprep.subr.bf16.mxu0 0
    %1406 = vmatpush1.bf16.msra.mxu0 0
    %1407 = vmatprep.subr.bf16.mxu0 0
    %1408 = vmatpush1.bf16.msra.mxu0 0
    %1409 = vmatprep.subr.bf16.mxu0 0
    %1410 = vmatpush1.bf16.msra.mxu0 %v417
    %1411 = vmatprep.subr.bf16.mxu0 0
    %1412 = vmatpush1.bf16.msra.mxu0 %v416
    %1413 = vmatprep.subr.bf16.mxu0 0
    %1414 = vmatpush2.bf16.msra.mxu0 0
    %1415 = vmatprep.subr.bf16.mxu0 0
    %1416 = vmatpush2.bf16.msra.mxu0 0
    %1417 = vmatprep.subr.bf16.mxu0 0
    %1418 = vmatpush2.bf16.msra.mxu0 0
    %1419 = vmatprep.subr.bf16.mxu0 0
    %1420 = vmatpush2.bf16.msra.mxu0 0
    %1421 = vmatprep.subr.bf16.mxu0 0
    %1422 = vmatpush2.bf16.msra.mxu0 0
    %1423 = vmatprep.subr.bf16.mxu0 0
    %1424 = vmatpush2.bf16.msra.mxu0 0
    %1425 = vmatprep.subr.bf16.mxu0 0
    %1426 = vmatpush2.bf16.msra.mxu0 0
    %1427 = vmatprep.subr.bf16.mxu0 0
    %1428 = vmatpush2.bf16.msra.mxu0 0
    %1429 = vmatprep.mubr.bf16.mxu0 0
    %1430 = vmatmul.mubr.bf16.gmra.mxu0 %v1283
    %v1431 = vpop.f32.mrf.mxu0
    %v1432 = vadd.f32 %v1392, %v1431
    %v1433 = vpop.f32.mrf.mxu0
    %v1434 = vpop.f32.mrf.mxu0
    %v1435 = vpop.f32.mrf.mxu0
    %1436 = vdwg.mxu0
    %v1437 = vadd.f32 %v1432, %v188
    %v1438 = vxor.u32 %v1437, 2147483648
    %v1439 = vmul.f32 %v1438, 1.442695
    %v1440 = vpow.pop %v1439
    %v1441 = vadd.f32 %v1440, 1.0
    %v1442 = vrcp.pop %v1441
    %v1443 = vmul.f32 1.0, %v1442
    %v1444 = vtanh.pop %v1437
    %v1445 = vmul.f32 %v1443, %v1276
    %1447 = vrot.lane.b32.xlu0 %v1444, 32
    %v1448 = vpop.permute.xlu0 %1447
    %v1450 = vmul.f32 %v1443, %v1448
    %1452 = vrot.lane.b32.xlu0 %v1450, 32
    %v1453 = vpop.permute.xlu0 %1452
    %v1455 = vadd.f32 %v1445, %v1453
    %v1456 = vtanh.pop %v1455
    %1458 = vrot.lane.b32.xlu0 %v1456, 32
    %v1459 = vpop.permute.xlu0 %1458
    %v1461 = vmul.f32 %v1443, %v1459
    %p1462 = scmp.gt.s32.totalorder %s175, 6
    %s1463 = scalar_select %p1462, 1, 0
    %v1464 = vstv %s1463
    %vm1465 = vcmp.eq.s32.totalorder %v1464, 1
    %v1466 = vsel %vm1465, %v1349, %v1273
    %v1467 = vsel %vm1465, %v1343, %v1274
    %v1468 = vsel %vm1272, %v1461, %v1275
    %v1469 = vsel %vm1272, %v1455, %v1276
    %v1470 = vpack.c.bf16 %v1466, %v1466
    %v1471 = vld [vmem:[#allocation3 + $0x7] sm:$0x1]
    %1473 = vrot.lane.b32.xlu0 %v1470, 64
    %v1474 = vpop.permute.xlu0 %1473
    %v1476 = vsel %vm127, %v1474, 0
    %1478 = vmatprep.subr.bf16.mxu0 0
    %1479 = vmatpush1.bf16.msra.mxu0 0
    %1480 = vmatprep.subr.bf16.mxu0 0
    %1481 = vmatpush1.bf16.msra.mxu0 0
    %1482 = vmatprep.subr.bf16.mxu0 0
    %1483 = vmatpush1.bf16.msra.mxu0 0
    %1484 = vmatprep.subr.bf16.mxu0 0
    %1485 = vmatpush1.bf16.msra.mxu0 0
    %1486 = vmatprep.subr.bf16.mxu0 0
    %1487 = vmatpush1.bf16.msra.mxu0 0
    %1488 = vmatprep.subr.bf16.mxu0 0
    %1489 = vmatpush1.bf16.msra.mxu0 0
    %1490 = vmatprep.subr.bf16.mxu0 0
    %1491 = vmatpush1.bf16.msra.mxu0 %v204
    %1492 = vmatprep.subr.bf16.mxu0 0
    %1493 = vmatpush1.bf16.msra.mxu0 %v203
    %1494 = vmatprep.subr.bf16.mxu0 0
    %1495 = vmatpush2.bf16.msra.mxu0 0
    %1496 = vmatprep.subr.bf16.mxu0 0
    %1497 = vmatpush2.bf16.msra.mxu0 0
    %1498 = vmatprep.subr.bf16.mxu0 0
    %1499 = vmatpush2.bf16.msra.mxu0 0
    %1500 = vmatprep.subr.bf16.mxu0 0
    %1501 = vmatpush2.bf16.msra.mxu0 0
    %1502 = vmatprep.subr.bf16.mxu0 0
    %1503 = vmatpush2.bf16.msra.mxu0 0
    %1504 = vmatprep.subr.bf16.mxu0 0
    %1505 = vmatpush2.bf16.msra.mxu0 0
    %1506 = vmatprep.subr.bf16.mxu0 0
    %1507 = vmatpush2.bf16.msra.mxu0 0
    %1508 = vmatprep.subr.bf16.mxu0 0
    %1509 = vmatpush2.bf16.msra.mxu0 0
    %1510 = vmatprep.mubr.bf16.mxu0 0
    %1511 = vmatmul.mubr.bf16.gmra.mxu0 %v1476
    %v1512 = vpop.f32.mrf.mxu0
    %v1513 = vadd.f32 0.0, %v1512
    %v1514 = vpop.f32.mrf.mxu0
    %v1515 = vpop.f32.mrf.mxu0
    %v1516 = vpop.f32.mrf.mxu0
    %1517 = vdwg.mxu0
    %v1518 = vadd.f32 %v1471, %v1513
    %v1519 = vxor.u32 %v1518, 2147483648
    %v1520 = vmul.f32 %v1519, 1.442695
    %v1521 = vpow.pop %v1520
    %v1522 = vadd.f32 %v1521, 1.0
    %v1523 = vrcp.pop %v1522
    %v1524 = vmul.f32 1.0, %v1523
    %v1525 = vtanh.pop %v1518
    %v1526 = vmul.f32 %v1524, %v1467
    %1528 = vrot.lane.b32.xlu0 %v1525, 32
    %v1529 = vpop.permute.xlu0 %1528
    %v1531 = vmul.f32 %v1524, %v1529
    %1533 = vrot.lane.b32.xlu0 %v1531, 32
    %v1534 = vpop.permute.xlu0 %1533
    %v1536 = vadd.f32 %v1526, %v1534
    %v1537 = vtanh.pop %v1536
    %1539 = vrot.lane.b32.xlu0 %v1537, 32
    %v1540 = vpop.permute.xlu0 %1539
    %v1542 = vmul.f32 %v1524, %v1540
    %v1543 = vpack.c.bf16 %v1468, %v1468
    %1545 = vrot.lane.b32.xlu0 %v1543, 64
    %v1546 = vpop.permute.xlu0 %1545
    %v1548 = vsel %vm127, %v1546, 0
    %1550 = vmatprep.subr.bf16.mxu0 0
    %1551 = vmatpush1.bf16.msra.mxu0 0
    %1552 = vmatprep.subr.bf16.mxu0 0
    %1553 = vmatpush1.bf16.msra.mxu0 0
    %1554 = vmatprep.subr.bf16.mxu0 0
    %1555 = vmatpush1.bf16.msra.mxu0 0
    %1556 = vmatprep.subr.bf16.mxu0 0
    %1557 = vmatpush1.bf16.msra.mxu0 0
    %1558 = vmatprep.subr.bf16.mxu0 0
    %1559 = vmatpush1.bf16.msra.mxu0 0
    %1560 = vmatprep.subr.bf16.mxu0 0
    %1561 = vmatpush1.bf16.msra.mxu0 0
    %1562 = vmatprep.subr.bf16.mxu0 0
    %1563 = vmatpush1.bf16.msra.mxu0 %v362
    %1564 = vmatprep.subr.bf16.mxu0 0
    %1565 = vmatpush1.bf16.msra.mxu0 %v361
    %1566 = vmatprep.subr.bf16.mxu0 0
    %1567 = vmatpush2.bf16.msra.mxu0 0
    %1568 = vmatprep.subr.bf16.mxu0 0
    %1569 = vmatpush2.bf16.msra.mxu0 0
    %1570 = vmatprep.subr.bf16.mxu0 0
    %1571 = vmatpush2.bf16.msra.mxu0 0
    %1572 = vmatprep.subr.bf16.mxu0 0
    %1573 = vmatpush2.bf16.msra.mxu0 0
    %1574 = vmatprep.subr.bf16.mxu0 0
    %1575 = vmatpush2.bf16.msra.mxu0 0
    %1576 = vmatprep.subr.bf16.mxu0 0
    %1577 = vmatpush2.bf16.msra.mxu0 0
    %1578 = vmatprep.subr.bf16.mxu0 0
    %1579 = vmatpush2.bf16.msra.mxu0 0
    %1580 = vmatprep.subr.bf16.mxu0 0
    %1581 = vmatpush2.bf16.msra.mxu0 0
    %1582 = vmatprep.mubr.bf16.mxu0 0
    %1583 = vmatmul.mubr.bf16.gmra.mxu0 %v1548
    %v1584 = vpop.f32.mrf.mxu0
    %v1585 = vadd.f32 0.0, %v1584
    %v1586 = vpop.f32.mrf.mxu0
    %v1587 = vpop.f32.mrf.mxu0
    %v1588 = vpop.f32.mrf.mxu0
    %1589 = vdwg.mxu0
    %1590 = vmatprep.subr.bf16.mxu0 0
    %1591 = vmatpush1.bf16.msra.mxu0 0
    %1592 = vmatprep.subr.bf16.mxu0 0
    %1593 = vmatpush1.bf16.msra.mxu0 0
    %1594 = vmatprep.subr.bf16.mxu0 0
    %1595 = vmatpush1.bf16.msra.mxu0 0
    %1596 = vmatprep.subr.bf16.mxu0 0
    %1597 = vmatpush1.bf16.msra.mxu0 0
    %1598 = vmatprep.subr.bf16.mxu0 0
    %1599 = vmatpush1.bf16.msra.mxu0 0
    %1600 = vmatprep.subr.bf16.mxu0 0
    %1601 = vmatpush1.bf16.msra.mxu0 0
    %1602 = vmatprep.subr.bf16.mxu0 0
    %1603 = vmatpush1.bf16.msra.mxu0 %v417
    %1604 = vmatprep.subr.bf16.mxu0 0
    %1605 = vmatpush1.bf16.msra.mxu0 %v416
    %1606 = vmatprep.subr.bf16.mxu0 0
    %1607 = vmatpush2.bf16.msra.mxu0 0
    %1608 = vmatprep.subr.bf16.mxu0 0
    %1609 = vmatpush2.bf16.msra.mxu0 0
    %1610 = vmatprep.subr.bf16.mxu0 0
    %1611 = vmatpush2.bf16.msra.mxu0 0
    %1612 = vmatprep.subr.bf16.mxu0 0
    %1613 = vmatpush2.bf16.msra.mxu0 0
    %1614 = vmatprep.subr.bf16.mxu0 0
    %1615 = vmatpush2.bf16.msra.mxu0 0
    %1616 = vmatprep.subr.bf16.mxu0 0
    %1617 = vmatpush2.bf16.msra.mxu0 0
    %1618 = vmatprep.subr.bf16.mxu0 0
    %1619 = vmatpush2.bf16.msra.mxu0 0
    %1620 = vmatprep.subr.bf16.mxu0 0
    %1621 = vmatpush2.bf16.msra.mxu0 0
    %1622 = vmatprep.mubr.bf16.mxu0 0
    %1623 = vmatmul.mubr.bf16.gmra.mxu0 %v1476
    %v1624 = vpop.f32.mrf.mxu0
    %v1625 = vadd.f32 %v1585, %v1624
    %v1626 = vpop.f32.mrf.mxu0
    %v1627 = vpop.f32.mrf.mxu0
    %v1628 = vpop.f32.mrf.mxu0
    %1629 = vdwg.mxu0
    %v1630 = vadd.f32 %v1625, %v188
    %v1631 = vxor.u32 %v1630, 2147483648
    %v1632 = vmul.f32 %v1631, 1.442695
    %v1633 = vpow.pop %v1632
    %v1634 = vadd.f32 %v1633, 1.0
    %v1635 = vrcp.pop %v1634
    %v1636 = vmul.f32 1.0, %v1635
    %v1637 = vtanh.pop %v1630
    %v1638 = vmul.f32 %v1636, %v1469
    %1640 = vrot.lane.b32.xlu0 %v1637, 32
    %v1641 = vpop.permute.xlu0 %1640
    %v1643 = vmul.f32 %v1636, %v1641
    %1645 = vrot.lane.b32.xlu0 %v1643, 32
    %v1646 = vpop.permute.xlu0 %1645
    %v1648 = vadd.f32 %v1638, %v1646
    %v1649 = vtanh.pop %v1648
    %1651 = vrot.lane.b32.xlu0 %v1649, 32
    %v1652 = vpop.permute.xlu0 %1651
    %v1654 = vmul.f32 %v1636, %v1652
    %p1655 = scmp.gt.s32.totalorder %s175, 7
    %s1656 = scalar_select %p1655, 1, 0
    %v1657 = vstv %s1656
    %vm1658 = vcmp.eq.s32.totalorder %v1657, 1
    %v1659 = vsel %vm1658, %v1542, %v1466
    %v1660 = vsel %vm1658, %v1536, %v1467
    %v1661 = vsel %vm1465, %v1654, %v1468
    %v1662 = vsel %vm1465, %v1648, %v1469
    %v1663 = vpack.c.bf16 %v1659, %v1659
    %1665 = vrot.lane.b32.xlu0 %v1663, 64
    %v1666 = vpop.permute.xlu0 %1665
    %v1668 = vsel %vm127, %v1666, 0
    %1670 = vmatprep.subr.bf16.mxu0 0
    %1671 = vmatpush1.bf16.msra.mxu0 0
    %1672 = vmatprep.subr.bf16.mxu0 0
    %1673 = vmatpush1.bf16.msra.mxu0 0
    %1674 = vmatprep.subr.bf16.mxu0 0
    %1675 = vmatpush1.bf16.msra.mxu0 0
    %1676 = vmatprep.subr.bf16.mxu0 0
    %1677 = vmatpush1.bf16.msra.mxu0 0
    %1678 = vmatprep.subr.bf16.mxu0 0
    %1679 = vmatpush1.bf16.msra.mxu0 0
    %1680 = vmatprep.subr.bf16.mxu0 0
    %1681 = vmatpush1.bf16.msra.mxu0 0
    %1682 = vmatprep.subr.bf16.mxu0 0
    %1683 = vmatpush1.bf16.msra.mxu0 %v204
    %1684 = vmatprep.subr.bf16.mxu0 0
    %1685 = vmatpush1.bf16.msra.mxu0 %v203
    %1686 = vmatprep.subr.bf16.mxu0 0
    %1687 = vmatpush2.bf16.msra.mxu0 0
    %1688 = vmatprep.subr.bf16.mxu0 0
    %1689 = vmatpush2.bf16.msra.mxu0 0
    %1690 = vmatprep.subr.bf16.mxu0 0
    %1691 = vmatpush2.bf16.msra.mxu0 0
    %1692 = vmatprep.subr.bf16.mxu0 0
    %1693 = vmatpush2.bf16.msra.mxu0 0
    %1694 = vmatprep.subr.bf16.mxu0 0
    %1695 = vmatpush2.bf16.msra.mxu0 0
    %1696 = vmatprep.subr.bf16.mxu0 0
    %1697 = vmatpush2.bf16.msra.mxu0 0
    %1698 = vmatprep.subr.bf16.mxu0 0
    %1699 = vmatpush2.bf16.msra.mxu0 0
    %1700 = vmatprep.subr.bf16.mxu0 0
    %1701 = vmatpush2.bf16.msra.mxu0 0
    %1702 = vmatprep.mubr.bf16.mxu0 0
    %1703 = vmatmul.mubr.bf16.gmra.mxu0 %v1668
    %v1704 = vpop.f32.mrf.mxu0
    %v1705 = vadd.f32 0.0, %v1704
    %v1706 = vpop.f32.mrf.mxu0
    %v1707 = vpop.f32.mrf.mxu0
    %v1708 = vpop.f32.mrf.mxu0
    %1709 = vdwg.mxu0
    %v1710 = vadd.f32 %v1471, %v1705
    %v1711 = vxor.u32 %v1710, 2147483648
    %v1712 = vmul.f32 %v1711, 1.442695
    %v1713 = vpow.pop %v1712
    %v1714 = vadd.f32 %v1713, 1.0
    %v1715 = vrcp.pop %v1714
    %v1716 = vmul.f32 1.0, %v1715
    %v1717 = vtanh.pop %v1710
    %v1718 = vmul.f32 %v1716, %v1660
    %1720 = vrot.lane.b32.xlu0 %v1717, 32
    %v1721 = vpop.permute.xlu0 %1720
    %v1723 = vmul.f32 %v1716, %v1721
    %1725 = vrot.lane.b32.xlu0 %v1723, 32
    %v1726 = vpop.permute.xlu0 %1725
    %v1728 = vadd.f32 %v1718, %v1726
    %v1729 = vtanh.pop %v1728
    %1731 = vrot.lane.b32.xlu0 %v1729, 32
    %v1732 = vpop.permute.xlu0 %1731
    %v1734 = vmul.f32 %v1716, %v1732
    %v1735 = vpack.c.bf16 %v1661, %v1661
    %1737 = vrot.lane.b32.xlu0 %v1735, 64
    %v1738 = vpop.permute.xlu0 %1737
    %v1740 = vsel %vm127, %v1738, 0
    %1742 = vmatprep.subr.bf16.mxu0 0
    %1743 = vmatpush1.bf16.msra.mxu0 0
    %1744 = vmatprep.subr.bf16.mxu0 0
    %1745 = vmatpush1.bf16.msra.mxu0 0
    %1746 = vmatprep.subr.bf16.mxu0 0
    %1747 = vmatpush1.bf16.msra.mxu0 0
    %1748 = vmatprep.subr.bf16.mxu0 0
    %1749 = vmatpush1.bf16.msra.mxu0 0
    %1750 = vmatprep.subr.bf16.mxu0 0
    %1751 = vmatpush1.bf16.msra.mxu0 0
    %1752 = vmatprep.subr.bf16.mxu0 0
    %1753 = vmatpush1.bf16.msra.mxu0 0
    %1754 = vmatprep.subr.bf16.mxu0 0
    %1755 = vmatpush1.bf16.msra.mxu0 %v362
    %1756 = vmatprep.subr.bf16.mxu0 0
    %1757 = vmatpush1.bf16.msra.mxu0 %v361
    %1758 = vmatprep.subr.bf16.mxu0 0
    %1759 = vmatpush2.bf16.msra.mxu0 0
    %1760 = vmatprep.subr.bf16.mxu0 0
    %1761 = vmatpush2.bf16.msra.mxu0 0
    %1762 = vmatprep.subr.bf16.mxu0 0
    %1763 = vmatpush2.bf16.msra.mxu0 0
    %1764 = vmatprep.subr.bf16.mxu0 0
    %1765 = vmatpush2.bf16.msra.mxu0 0
    %1766 = vmatprep.subr.bf16.mxu0 0
    %1767 = vmatpush2.bf16.msra.mxu0 0
    %1768 = vmatprep.subr.bf16.mxu0 0
    %1769 = vmatpush2.bf16.msra.mxu0 0
    %1770 = vmatprep.subr.bf16.mxu0 0
    %1771 = vmatpush2.bf16.msra.mxu0 0
    %1772 = vmatprep.subr.bf16.mxu0 0
    %1773 = vmatpush2.bf16.msra.mxu0 0
    %1774 = vmatprep.mubr.bf16.mxu0 0
    %1775 = vmatmul.mubr.bf16.gmra.mxu0 %v1740
    %v1776 = vpop.f32.mrf.mxu0
    %v1777 = vadd.f32 0.0, %v1776
    %v1778 = vpop.f32.mrf.mxu0
    %v1779 = vpop.f32.mrf.mxu0
    %v1780 = vpop.f32.mrf.mxu0
    %1781 = vdwg.mxu0
    %1782 = vmatprep.subr.bf16.mxu0 0
    %1783 = vmatpush1.bf16.msra.mxu0 0
    %1784 = vmatprep.subr.bf16.mxu0 0
    %1785 = vmatpush1.bf16.msra.mxu0 0
    %1786 = vmatprep.subr.bf16.mxu0 0
    %1787 = vmatpush1.bf16.msra.mxu0 0
    %1788 = vmatprep.subr.bf16.mxu0 0
    %1789 = vmatpush1.bf16.msra.mxu0 0
    %1790 = vmatprep.subr.bf16.mxu0 0
    %1791 = vmatpush1.bf16.msra.mxu0 0
    %1792 = vmatprep.subr.bf16.mxu0 0
    %1793 = vmatpush1.bf16.msra.mxu0 0
    %1794 = vmatprep.subr.bf16.mxu0 0
    %1795 = vmatpush1.bf16.msra.mxu0 %v417
    %1796 = vmatprep.subr.bf16.mxu0 0
    %1797 = vmatpush1.bf16.msra.mxu0 %v416
    %1798 = vmatprep.subr.bf16.mxu0 0
    %1799 = vmatpush2.bf16.msra.mxu0 0
    %1800 = vmatprep.subr.bf16.mxu0 0
    %1801 = vmatpush2.bf16.msra.mxu0 0
    %1802 = vmatprep.subr.bf16.mxu0 0
    %1803 = vmatpush2.bf16.msra.mxu0 0
    %1804 = vmatprep.subr.bf16.mxu0 0
    %1805 = vmatpush2.bf16.msra.mxu0 0
    %1806 = vmatprep.subr.bf16.mxu0 0
    %1807 = vmatpush2.bf16.msra.mxu0 0
    %1808 = vmatprep.subr.bf16.mxu0 0
    %1809 = vmatpush2.bf16.msra.mxu0 0
    %1810 = vmatprep.subr.bf16.mxu0 0
    %1811 = vmatpush2.bf16.msra.mxu0 0
    %1812 = vmatprep.subr.bf16.mxu0 0
    %1813 = vmatpush2.bf16.msra.mxu0 0
    %1814 = vmatprep.mubr.bf16.mxu0 0
    %1815 = vmatmul.mubr.bf16.gmra.mxu0 %v1668
    %v1816 = vpop.f32.mrf.mxu0
    %v1817 = vadd.f32 %v1777, %v1816
    %v1818 = vpop.f32.mrf.mxu0
    %v1819 = vpop.f32.mrf.mxu0
    %v1820 = vpop.f32.mrf.mxu0
    %1821 = vdwg.mxu0
    %v1822 = vadd.f32 %v1817, %v188
    %v1823 = vxor.u32 %v1822, 2147483648
    %v1824 = vmul.f32 %v1823, 1.442695
    %v1825 = vpow.pop %v1824
    %v1826 = vadd.f32 %v1825, 1.0
    %v1827 = vrcp.pop %v1826
    %v1828 = vmul.f32 1.0, %v1827
    %v1829 = vtanh.pop %v1822
    %v1830 = vmul.f32 %v1828, %v1662
    %1832 = vrot.lane.b32.xlu0 %v1829, 32
    %v1833 = vpop.permute.xlu0 %1832
    %v1835 = vmul.f32 %v1828, %v1833
    %1837 = vrot.lane.b32.xlu0 %v1835, 32
    %v1838 = vpop.permute.xlu0 %1837
    %v1840 = vadd.f32 %v1830, %v1838
    %v1841 = vtanh.pop %v1840
    %1843 = vrot.lane.b32.xlu0 %v1841, 32
    %v1844 = vpop.permute.xlu0 %1843
    %v1846 = vmul.f32 %v1828, %v1844
    %p1847 = scmp.gt.s32.totalorder %s175, 8
    %s1848 = scalar_select %p1847, 1, 0
    %v1849 = vstv %s1848
    %vm1850 = vcmp.eq.s32.totalorder %v1849, 1
    %v1851 = vsel %vm1850, %v1734, %v1659
    %v1852 = vsel %vm1850, %v1728, %v1660
    %v1853 = vsel %vm1658, %v1846, %v1661
    %v1854 = vsel %vm1658, %v1840, %v1662
    %1856 = vrot.lane.b32.xlu0 %v1851, 64
    %v1857 = vpop.permute.xlu0 %1856
    %vm1859 = vcmask 253952
    %1860 = vst.msk [vmem:[#allocation2] sm:$0x1] %vm1859, %v1857
    %1862 = vrot.lane.b32.xlu0 %v1852, 96
    %v1863 = vpop.permute.xlu0 %1862
    %1865 = vst.msk [vmem:[#allocation2 + $0x1] sm:$0x1] %vm1859, %v1863
    %1867 = vrot.lane.b32.xlu0 %v1853, 64
    %v1868 = vpop.permute.xlu0 %1867
    %1870 = vst.msk [vmem:[#allocation2 + $0x2] sm:$0x1] %vm1859, %v1868
    %1872 = vrot.lane.b32.xlu0 %v1854, 96
    %v1873 = vpop.permute.xlu0 %1872
    %1875 = vst.msk [vmem:[#allocation2 + $0x3] sm:$0x1] %vm1859, %v1873
    // Predicated region
    $region54: #{tpu_custom_call.1} parent=1 // pred_check
      %p1876 = pneg %p97
    $region55: #{tpu_custom_call.1} parent=1 // pred_check_branch
      %1878 = sbr.rel (%p1876) target = $region57
    $region56: #{tpu_custom_call.1} parent=1 // pred_region
      %1879 = vst.msk [vmem:[#allocation13] sm:$0x1] %vm1859, %v1857
      %1880 = vst.msk [vmem:[#allocation13 + $0x1] sm:$0x1] %vm1859, %v1868
      %1881 = vst.msk [vmem:[#allocation14] sm:$0x1] %vm1859, %v1863
      %1882 = vst.msk [vmem:[#allocation14 + $0x1] sm:$0x1] %vm1859, %v1873
    $region57: #{tpu_custom_call.1} parent=1 // pred_fallthru
      _
    // Predicated region
    $region58: #{tpu_custom_call.1} parent=1 // pred_check
      _
    $region59: #{tpu_custom_call.1} parent=1 // pred_check_branch
      %1884 = sbr.rel (0) target = $region61
    $region60: #{tpu_custom_call.1} parent=1 // pred_region
      %s1886 = ssub.s32 32, 32
      %1887 = vsyncadd [#allocation6], %s1886
      %s1889 = sshll.u32 [#allocation13], 4
      %s1890 = int_to_ptr.vmem [resolvable:$true] %s1889
      %1892 = dma.vmem_to_hbm [thread:$0]  %s1890, 32, %s7, [#allocation6]
    $region61: #{tpu_custom_call.1} parent=1 // pred_fallthru
      _
    // Predicated region
    $region62: #{tpu_custom_call.1} parent=1 // pred_check
      _
    $region63: #{tpu_custom_call.1} parent=1 // pred_check_branch
      %1894 = sbr.rel (0) target = $region65
    $region64: #{tpu_custom_call.1} parent=1 // pred_region
      %s1896 = ssub.s32 32, 32
      %1897 = vsyncadd [#allocation15], %s1896
      %s1899 = sshll.u32 [#allocation14], 4
      %s1900 = int_to_ptr.vmem [resolvable:$true] %s1899
      %1902 = dma.vmem_to_hbm [thread:$0]  %s1900, 32, %s8, [#allocation15]
    $region65: #{tpu_custom_call.1} parent=1 // pred_fallthru
      _
    // Predicated region
    $region66: #{tpu_custom_call.1} parent=1 // pred_check
      _
    $region67: #{tpu_custom_call.1} parent=1 // pred_check_branch
      %1904 = sbr.rel (0) target = $region69
    $region68: #{tpu_custom_call.1} parent=1 // pred_region
      %1905 = dma.done [#allocation6], 32
    $region69: #{tpu_custom_call.1} parent=1 // pred_fallthru
      _
    // Predicated region
    $region70: #{tpu_custom_call.1} parent=1 // pred_check
      _
    $region71: #{tpu_custom_call.1} parent=1 // pred_check_branch
      %1907 = sbr.rel (0) target = $region73
    $region72: #{tpu_custom_call.1} parent=1 // pred_region
      %1908 = dma.done [#allocation15], 32
    $region73: #{tpu_custom_call.1} parent=1 // pred_fallthru
      _
    %1909 = vsyncpa [#allocation5], 1
    %1910 = vsyncpa [#allocation8], 1
    %1911 = vsyncpa [#allocation11], 1
    %1912 = vsyncpa [#allocation6], 1
    %1913 = vsyncpa [#allocation15], 1

</llo_original>
